<compile_context>
chip_gen: v7x
topology: tpu7x:2x2x1
jax: 0.10.0
libtpu: 0.0.40
codegen_flags: <defaults>
</compile_context>

<pallas_src>
import jax
import jax.numpy as jnp
from jax.experimental import pallas as pl
from jax.experimental.pallas import tpu as pltpu

C1, C2, C3 = 64, 128, 1024  # PointNet channel widths (fixed by the module)


# ---------------------------------------------------------------------------
# Pallas kernel: grid = (batch tiles, point tiles)   [point axis = reduction]
# ---------------------------------------------------------------------------
def pointnet_kernel(x_ref, w1_ref, b1_ref, w2_ref, b2_ref, w3_ref, b3_ref,
                    w4_ref, b4_ref, o_ref, gmax_ref):
    j = pl.program_id(1)

    @pl.when(j == 0)
    def _():
        gmax_ref[...] = jnp.full_like(gmax_ref, -jnp.inf)

    tb, tn, _ = x_ref.shape
    x = x_ref[...].reshape(tb * tn, 3)                          # (M, 3) f32

    # conv1 + bn1 + relu: K=3 contraction done as VPU broadcast FMAs
    # (keeps the MXU for the big contractions, avoids a degenerate K=3 op).
    w1 = w1_ref[...]                                            # (3, 64) f32
    h1 = (x[:, 0:1] * w1[0:1, :]
          + x[:, 1:2] * w1[1:2, :]
          + x[:, 2:3] * w1[2:3, :]
          + b1_ref[...])
    h1 = jnp.maximum(h1, 0.0)                                   # (M, 64) f32

    # conv2 + bn2 + relu: bf16 operands, f32 MXU accumulation.
    h2 = jnp.dot(h1.astype(jnp.bfloat16), w2_ref[...],
                 preferred_element_type=jnp.float32) + b2_ref[...]
    h2 = jnp.maximum(h2, 0.0)                                   # (M, 128) f32

    # conv3 + bn3 + relu.
    h3 = jnp.dot(h2.astype(jnp.bfloat16), w3_ref[...],
                 preferred_element_type=jnp.float32) + b3_ref[...]
    h3 = jnp.maximum(h3, 0.0)                                   # (M, 1024) f32

    # Per-sample max over this point tile, folded into the running max.
    tile_max = jnp.max(h3.reshape(tb, tn, C3), axis=1)          # (TB, 1024)
    gmax_ref[...] = jnp.maximum(gmax_ref[...], tile_max)

    # Last point tile: fc1 + bn4 + relu on the pooled features, then store.
    @pl.when(j == pl.num_programs(1) - 1)
    def _():
        out = jnp.dot(gmax_ref[...].astype(jnp.bfloat16), w4_ref[...],
                      preferred_element_type=jnp.float32) + b4_ref[...]
        o_ref[...] = jnp.maximum(out, 0.0).astype(o_ref.dtype)


# ---------------------------------------------------------------------------
# Tiling heuristic: target >=256 matmul rows per step, keep the f32 (M, 1024)
# intermediate modest, keep tiles divisors of (B, N) and sublane-friendly.
# ---------------------------------------------------------------------------
def _pick_tiles(B, N, *, target_rows=256, max_h3_bytes=8 << 20):
    tn = N
    if N % 8 == 0:
        tn = max(d for d in range(8, min(N, 1024) + 1, 8) if N % d == 0)
    tb = 1
    for cand in range(1, B + 1):
        if B % cand:
            continue
        if cand * tn * C3 * 4 > max_h3_bytes:
            break
        tb = cand
        if cand * tn >= target_rows:
            break
    return tb, tn


def pointnet_cls_forward(x_bnc, params):
    """x_bnc: (B, N, 3) float32. params: dict of BN-folded weights/biases."""
    B, N, _ = x_bnc.shape
    w1, b1 = params["w1"], params["b1"]      # (3, 64) f32,      (1, 64) f32
    w2, b2 = params["w2"], params["b2"]      # (64, 128) bf16,   (1, 128) f32
    w3, b3 = params["w3"], params["b3"]      # (128, 1024) bf16, (1, 1024) f32
    w4, b4 = params["w4"], params["b4"]      # (1024, E) bf16,   (1, E) f32
    E = w4.shape[1]

    TB, TN = _pick_tiles(B, N)
    grid = (B // TB, N // TN)

    full = lambda arr: pl.BlockSpec(arr.shape, lambda i, j: (0,) * arr.ndim)

    flops = 2 * B * N * (3 * C1 + C1 * C2 + C2 * C3) + 2 * B * C3 * E
    bytes_accessed = (int(x_bnc.size) * x_bnc.dtype.itemsize
                      + sum(int(params[k].size) * params[k].dtype.itemsize
                            for k in params)
                      + B * E * 4)

    return pl.pallas_call(
        pointnet_kernel,
        out_shape=jax.ShapeDtypeStruct((B, E), jnp.float32),
        grid_spec=pltpu.PrefetchScalarGridSpec(
            num_scalar_prefetch=0,
            grid=grid,
            in_specs=[
                pl.BlockSpec((TB, TN, 3), lambda i, j: (i, j, 0)),
                full(w1), full(b1),
                full(w2), full(b2),
                full(w3), full(b3),
                full(w4), full(b4),
            ],
            out_specs=pl.BlockSpec((TB, E), lambda i, j: (i, 0)),
            scratch_shapes=[pltpu.VMEM((TB, C3), jnp.float32)],
        ),
        compiler_params=pltpu.CompilerParams(
            dimension_semantics=("parallel", "arbitrary")),
        cost_estimate=pl.CostEstimate(
            flops=flops, transcendentals=0, bytes_accessed=bytes_accessed),
    )(x_bnc, w1, b1, w2, b2, w3, b3, w4, b4)


# ---------------------------------------------------------------------------
# Deterministic parameter construction + BatchNorm folding (plain-JAX glue).
# ---------------------------------------------------------------------------
def _fold_bn(w, b, gamma, beta, mean, var, eps=1e-5):
    """Fold eval-mode BatchNorm into a preceding linear: y = s*(xW+b) + t."""
    s = gamma / jnp.sqrt(var + eps)            # (Cout,)
    return w * s[None, :], (b - mean) * s + beta


def make_params(key, embed):
    dims = [(3, C1), (C1, C2), (C2, C3), (C3, embed)]
    # conv1 weights stay f32 (used on the VPU); the MXU weights are bf16.
    w_dtypes = [jnp.float32, jnp.bfloat16, jnp.bfloat16, jnp.bfloat16]
    params = {}
    keys = jax.random.split(key, len(dims) * 6)
    for i, (cin, cout) in enumerate(dims):
        k = keys[i * 6:(i + 1) * 6]
        w = jax.random.normal(k[0], (cin, cout), jnp.float32) / jnp.sqrt(cin)
        b = 0.1 * jax.random.normal(k[1], (cout,), jnp.float32)
        gamma = 1.0 + 0.1 * jax.random.normal(k[2], (cout,), jnp.float32)
        beta = 0.1 * jax.random.normal(k[3], (cout,), jnp.float32)
        mean = 0.1 * jax.random.normal(k[4], (cout,), jnp.float32)
        var = jnp.abs(jax.random.normal(k[5], (cout,), jnp.float32)) + 0.5
        wf, bf = _fold_bn(w, b, gamma, beta, mean, var)
        params[f"w{i + 1}"] = wf.astype(w_dtypes[i])
        params[f"b{i + 1}"] = bf[None, :].astype(jnp.float32)
    return params


def reference_forward(x_bnc, params):
    """Pure-JAX reference mirroring the kernel's bf16-operand / f32-acc math."""
    h = jnp.maximum(
        jnp.einsum("bnc,cd->bnd", x_bnc, params["w1"]) + params["b1"][None],
        0.0)
    for i in (2, 3):
        h = jnp.maximum(
            jnp.einsum("bnc,cd->bnd", h.astype(jnp.bfloat16), params[f"w{i}"],
                       preferred_element_type=jnp.float32)
            + params[f"b{i}"][None], 0.0)
    g = jnp.max(h, axis=1)                                        # (B, 1024)
    out = jnp.dot(g.astype(jnp.bfloat16), params["w4"],
                  preferred_element_type=jnp.float32) + params["b4"]
    return jnp.maximum(out, 0.0)                                  # (B, E)


if __name__ == "__main__":
    B, N, EMBED = 2, 64, 128   # batch=2, 64 points, embed=128
    key = jax.random.PRNGKey(0)
    k_x, k_p = jax.random.split(key)

    # PyTorch input would be (B, 3, N); kernel layout is (B, N, 3).
    x = jax.random.normal(k_x, (B, N, 3), jnp.float32)
    params = make_params(k_p, EMBED)

    out = jax.block_until_ready(pointnet_cls_forward(x, params))
    ref = reference_forward(x, params)

    assert out.shape == (B, EMBED)
    assert jnp.allclose(out, ref, atol=2e-2, rtol=2e-2), "mismatch vs reference"

    print("KERNEL_OK")
</pallas_src>

<mosaic_0001>
module attributes {stable_mosaic.version = 11 : i64} {
  func.func @pointnet_kernel(%arg0: i32, %arg1: i32, %arg2: memref<2x64x3xf32, #tpu.memory_space<vmem>>, %arg3: memref<3x64xf32, #tpu.memory_space<vmem>>, %arg4: memref<1x64xf32, #tpu.memory_space<vmem>>, %arg5: memref<64x128xbf16, #tpu.memory_space<vmem>>, %arg6: memref<1x128xf32, #tpu.memory_space<vmem>>, %arg7: memref<128x1024xbf16, #tpu.memory_space<vmem>>, %arg8: memref<1x1024xf32, #tpu.memory_space<vmem>>, %arg9: memref<1024x128xbf16, #tpu.memory_space<vmem>>, %arg10: memref<1x128xf32, #tpu.memory_space<vmem>>, %arg11: memref<2x128xf32, #tpu.memory_space<vmem>>, %arg12: memref<2x1024xf32, #tpu.memory_space<vmem>>) attributes {dimension_semantics = [#tpu.dimension_semantics<parallel>, #tpu.dimension_semantics<arbitrary>], iteration_bounds = array<i64: 1, 1>, scalar_prefetch = 0 : i64, scratch_operands = 1 : i64, tpu.core_type = #tpu.core_type<tc>, window_params = [{transform_indices = @transform_0, window_bounds = array<i64: 2, 64, 3>}, {pipeline_mode = #tpu.pipeline_mode<synchronous>, transform_indices = @transform_1, window_bounds = array<i64: 3, 64>}, {pipeline_mode = #tpu.pipeline_mode<synchronous>, transform_indices = @transform_2, window_bounds = array<i64: 1, 64>}, {pipeline_mode = #tpu.pipeline_mode<synchronous>, transform_indices = @transform_3, window_bounds = array<i64: 64, 128>}, {pipeline_mode = #tpu.pipeline_mode<synchronous>, transform_indices = @transform_4, window_bounds = array<i64: 1, 128>}, {pipeline_mode = #tpu.pipeline_mode<synchronous>, transform_indices = @transform_5, window_bounds = array<i64: 128, 1024>}, {pipeline_mode = #tpu.pipeline_mode<synchronous>, transform_indices = @transform_6, window_bounds = array<i64: 1, 1024>}, {pipeline_mode = #tpu.pipeline_mode<synchronous>, transform_indices = @transform_7, window_bounds = array<i64: 1024, 128>}, {pipeline_mode = #tpu.pipeline_mode<synchronous>, transform_indices = @transform_8, window_bounds = array<i64: 1, 128>}, {transform_indices = @transform_9, window_bounds = array<i64: 2, 128>}]} {
    %c0_i32 = arith.constant 0 : i32
    %0 = arith.cmpi eq, %arg1, %c0_i32 : i32
    %1 = arith.extui %0 : i1 to i32
    %c0_i32_0 = arith.constant 0 : i32
    %2 = arith.cmpi ne, %1, %c0_i32_0 : i32
    scf.if %2 {
      %cst_26 = arith.constant 0xFF800000 : f32
      %52 = vector.broadcast %cst_26 : f32 to vector<2x1024xf32>
      %c0_27 = arith.constant 0 : index
      %c0_28 = arith.constant 0 : index
      %53 = vector.load %arg12[%c0_27, %c0_28] : memref<2x1024xf32, #tpu.memory_space<vmem>>, vector<2x1024xf32>
      tpu.vector_store %arg12[%c0_27, %c0_28], %52 {strides = array<i32>} : memref<2x1024xf32, #tpu.memory_space<vmem>>, vector<2x1024xf32>,
    } else {
    }
    %c0 = arith.constant 0 : index
    %c0_1 = arith.constant 0 : index
    %c0_2 = arith.constant 0 : index
    %3 = vector.load %arg2[%c0, %c0_1, %c0_2] : memref<2x64x3xf32, #tpu.memory_space<vmem>>, vector<2x64x3xf32>
    %4 = vector.shape_cast %3 : vector<2x64x3xf32> to vector<128x3xf32>
    %c0_3 = arith.constant 0 : index
    %c0_4 = arith.constant 0 : index
    %5 = vector.load %arg3[%c0_3, %c0_4] : memref<3x64xf32, #tpu.memory_space<vmem>>, vector<3x64xf32>
    %6 = vector.extract_strided_slice %4 {offsets = [0, 0], sizes = [128, 1], strides = [1, 1]} : vector<128x3xf32> to vector<128x1xf32>
    %7 = vector.extract_strided_slice %5 {offsets = [0, 0], sizes = [1, 64], strides = [1, 1]} : vector<3x64xf32> to vector<1x64xf32>
    %8 = vector.broadcast %6 : vector<128x1xf32> to vector<128x64xf32>
    %9 = vector.broadcast %7 : vector<1x64xf32> to vector<128x64xf32>
    %10 = arith.mulf %8, %9 : vector<128x64xf32>
    %11 = vector.extract_strided_slice %4 {offsets = [0, 1], sizes = [128, 1], strides = [1, 1]} : vector<128x3xf32> to vector<128x1xf32>
    %12 = vector.extract_strided_slice %5 {offsets = [1, 0], sizes = [1, 64], strides = [1, 1]} : vector<3x64xf32> to vector<1x64xf32>
    %13 = vector.broadcast %11 : vector<128x1xf32> to vector<128x64xf32>
    %14 = vector.broadcast %12 : vector<1x64xf32> to vector<128x64xf32>
    %15 = arith.mulf %13, %14 : vector<128x64xf32>
    %16 = arith.addf %10, %15 : vector<128x64xf32>
    %17 = vector.extract_strided_slice %4 {offsets = [0, 2], sizes = [128, 1], strides = [1, 1]} : vector<128x3xf32> to vector<128x1xf32>
    %18 = vector.extract_strided_slice %5 {offsets = [2, 0], sizes = [1, 64], strides = [1, 1]} : vector<3x64xf32> to vector<1x64xf32>
    %19 = vector.broadcast %17 : vector<128x1xf32> to vector<128x64xf32>
    %20 = vector.broadcast %18 : vector<1x64xf32> to vector<128x64xf32>
    %21 = arith.mulf %19, %20 : vector<128x64xf32>
    %22 = arith.addf %16, %21 : vector<128x64xf32>
    %c0_5 = arith.constant 0 : index
    %c0_6 = arith.constant 0 : index
    %23 = vector.load %arg4[%c0_5, %c0_6] : memref<1x64xf32, #tpu.memory_space<vmem>>, vector<1x64xf32>
    %24 = vector.broadcast %23 : vector<1x64xf32> to vector<128x64xf32>
    %25 = arith.addf %22, %24 : vector<128x64xf32>
    %cst = arith.constant 0.000000e+00 : f32
    %26 = vector.broadcast %cst : f32 to vector<128x64xf32>
    %27 = arith.maximumf %25, %26 : vector<128x64xf32>
    %28 = arith.truncf %27 : vector<128x64xf32> to vector<128x64xbf16>
    %c0_7 = arith.constant 0 : index
    %c0_8 = arith.constant 0 : index
    %29 = vector.load %arg5[%c0_7, %c0_8] : memref<64x128xbf16, #tpu.memory_space<vmem>>, vector<64x128xbf16>
    %cst_9 = arith.constant dense<0.000000e+00> : vector<128x128xf32>
    %30 = tpu.matmul %28, %29, %cst_9 {dimension_numbers = #tpu.dot_dimension_numbers<[1], [0], [0], [1], [0, 0, 1, 1], [], []>} : vector<128x64xbf16>, vector<64x128xbf16>, vector<128x128xf32> -> vector<128x128xf32>
    %c0_10 = arith.constant 0 : index
    %c0_11 = arith.constant 0 : index
    %31 = vector.load %arg6[%c0_10, %c0_11] : memref<1x128xf32, #tpu.memory_space<vmem>>, vector<1x128xf32>
    %32 = vector.broadcast %31 : vector<1x128xf32> to vector<128x128xf32>
    %33 = arith.addf %30, %32 : vector<128x128xf32>
    %cst_12 = arith.constant 0.000000e+00 : f32
    %34 = vector.broadcast %cst_12 : f32 to vector<128x128xf32>
    %35 = arith.maximumf %33, %34 : vector<128x128xf32>
    %36 = arith.truncf %35 : vector<128x128xf32> to vector<128x128xbf16>
    %c0_13 = arith.constant 0 : index
    %c0_14 = arith.constant 0 : index
    %37 = vector.load %arg7[%c0_13, %c0_14] : memref<128x1024xbf16, #tpu.memory_space<vmem>>, vector<128x1024xbf16>
    %cst_15 = arith.constant dense<0.000000e+00> : vector<128x1024xf32>
    %38 = tpu.matmul %36, %37, %cst_15 {dimension_numbers = #tpu.dot_dimension_numbers<[1], [0], [0], [1], [0, 0, 1, 1], [], []>} : vector<128x128xbf16>, vector<128x1024xbf16>, vector<128x1024xf32> -> vector<128x1024xf32>
    %c0_16 = arith.constant 0 : index
    %c0_17 = arith.constant 0 : index
    %39 = vector.load %arg8[%c0_16, %c0_17] : memref<1x1024xf32, #tpu.memory_space<vmem>>, vector<1x1024xf32>
    %40 = vector.broadcast %39 : vector<1x1024xf32> to vector<128x1024xf32>
    %41 = arith.addf %38, %40 : vector<128x1024xf32>
    %cst_18 = arith.constant 0.000000e+00 : f32
    %42 = vector.broadcast %cst_18 : f32 to vector<128x1024xf32>
    %43 = arith.maximumf %41, %42 : vector<128x1024xf32>
    %44 = vector.shape_cast %43 : vector<128x1024xf32> to vector<2x64x1024xf32>
    %cst_19 = arith.constant dense<0xFF800000> : vector<2x1024xf32>
    %45 = vector.multi_reduction <maximumf>, %44, %cst_19 [1] : vector<2x64x1024xf32> to vector<2x1024xf32>
    %c0_20 = arith.constant 0 : index
    %c0_21 = arith.constant 0 : index
    %46 = vector.load %arg12[%c0_20, %c0_21] : memref<2x1024xf32, #tpu.memory_space<vmem>>, vector<2x1024xf32>
    %47 = arith.maximumf %46, %45 : vector<2x1024xf32>
    %c0_22 = arith.constant 0 : index
    %c0_23 = arith.constant 0 : index
    %48 = vector.load %arg12[%c0_22, %c0_23] : memref<2x1024xf32, #tpu.memory_space<vmem>>, vector<2x1024xf32>
    tpu.vector_store %arg12[%c0_22, %c0_23], %47 {strides = array<i32>} : memref<2x1024xf32, #tpu.memory_space<vmem>>, vector<2x1024xf32>,
    %c0_i32_24 = arith.constant 0 : i32
    %49 = arith.cmpi eq, %arg1, %c0_i32_24 : i32
    %50 = arith.extui %49 : i1 to i32
    %c0_i32_25 = arith.constant 0 : i32
    %51 = arith.cmpi ne, %50, %c0_i32_25 : i32
    scf.if %51 {
      %c0_26 = arith.constant 0 : index
      %c0_27 = arith.constant 0 : index
      %52 = vector.load %arg12[%c0_26, %c0_27] : memref<2x1024xf32, #tpu.memory_space<vmem>>, vector<2x1024xf32>
      %53 = arith.truncf %52 : vector<2x1024xf32> to vector<2x1024xbf16>
      %c0_28 = arith.constant 0 : index
      %c0_29 = arith.constant 0 : index
      %54 = vector.load %arg9[%c0_28, %c0_29] : memref<1024x128xbf16, #tpu.memory_space<vmem>>, vector<1024x128xbf16>
      %cst_30 = arith.constant dense<0.000000e+00> : vector<2x128xf32>
      %55 = tpu.matmul %53, %54, %cst_30 {dimension_numbers = #tpu.dot_dimension_numbers<[1], [0], [0], [1], [0, 0, 1, 1], [], []>} : vector<2x1024xbf16>, vector<1024x128xbf16>, vector<2x128xf32> -> vector<2x128xf32>
      %c0_31 = arith.constant 0 : index
      %c0_32 = arith.constant 0 : index
      %56 = vector.load %arg10[%c0_31, %c0_32] : memref<1x128xf32, #tpu.memory_space<vmem>>, vector<1x128xf32>
      %57 = vector.broadcast %56 : vector<1x128xf32> to vector<2x128xf32>
      %58 = arith.addf %55, %57 : vector<2x128xf32>
      %cst_33 = arith.constant 0.000000e+00 : f32
      %59 = vector.broadcast %cst_33 : f32 to vector<2x128xf32>
      %60 = arith.maximumf %58, %59 : vector<2x128xf32>
      %c0_34 = arith.constant 0 : index
      %c0_35 = arith.constant 0 : index
      %61 = vector.load %arg11[%c0_34, %c0_35] : memref<2x128xf32, #tpu.memory_space<vmem>>, vector<2x128xf32>
      tpu.vector_store %arg11[%c0_34, %c0_35], %60 {strides = array<i32>} : memref<2x128xf32, #tpu.memory_space<vmem>>, vector<2x128xf32>,
    } else {
    }
    return
  }
  func.func @transform_0(%arg0: i32, %arg1: i32) -> (i32, i32, i32) {
    %c0_i32 = arith.constant 0 : i32
    %c0_i32_0 = arith.constant 0 : i32
    return %arg0, %arg1, %c0_i32 : i32, i32, i32
  }
  func.func @transform_1(%arg0: i32, %arg1: i32) -> (i32, i32) {
    %c0_i32 = arith.constant 0 : i32
    %c0_i32_0 = arith.constant 0 : i32
    %c0_i32_1 = arith.constant 0 : i32
    return %c0_i32, %c0_i32_0 : i32, i32
  }
  func.func @transform_2(%arg0: i32, %arg1: i32) -> (i32, i32) {
    %c0_i32 = arith.constant 0 : i32
    %c0_i32_0 = arith.constant 0 : i32
    %c0_i32_1 = arith.constant 0 : i32
    return %c0_i32, %c0_i32_0 : i32, i32
  }
  func.func @transform_3(%arg0: i32, %arg1: i32) -> (i32, i32) {
    %c0_i32 = arith.constant 0 : i32
    %c0_i32_0 = arith.constant 0 : i32
    %c0_i32_1 = arith.constant 0 : i32
    return %c0_i32, %c0_i32_0 : i32, i32
  }
  func.func @transform_4(%arg0: i32, %arg1: i32) -> (i32, i32) {
    %c0_i32 = arith.constant 0 : i32
    %c0_i32_0 = arith.constant 0 : i32
    %c0_i32_1 = arith.constant 0 : i32
    return %c0_i32, %c0_i32_0 : i32, i32
  }
  func.func @transform_5(%arg0: i32, %arg1: i32) -> (i32, i32) {
    %c0_i32 = arith.constant 0 : i32
    %c0_i32_0 = arith.constant 0 : i32
    %c0_i32_1 = arith.constant 0 : i32
    return %c0_i32, %c0_i32_0 : i32, i32
  }
  func.func @transform_6(%arg0: i32, %arg1: i32) -> (i32, i32) {
    %c0_i32 = arith.constant 0 : i32
    %c0_i32_0 = arith.constant 0 : i32
    %c0_i32_1 = arith.constant 0 : i32
    return %c0_i32, %c0_i32_0 : i32, i32
  }
  func.func @transform_7(%arg0: i32, %arg1: i32) -> (i32, i32) {
    %c0_i32 = arith.constant 0 : i32
    %c0_i32_0 = arith.constant 0 : i32
    %c0_i32_1 = arith.constant 0 : i32
    return %c0_i32, %c0_i32_0 : i32, i32
  }
  func.func @transform_8(%arg0: i32, %arg1: i32) -> (i32, i32) {
    %c0_i32 = arith.constant 0 : i32
    %c0_i32_0 = arith.constant 0 : i32
    %c0_i32_1 = arith.constant 0 : i32
    return %c0_i32, %c0_i32_0 : i32, i32
  }
  func.func @transform_9(%arg0: i32, %arg1: i32) -> (i32, i32) {
    %c0_i32 = arith.constant 0 : i32
    %c0_i32_0 = arith.constant 0 : i32
    return %arg0, %c0_i32 : i32, i32
  }
}

</mosaic_0001>

<llo_original>
// kernel: tpu_custom_call.1
$region0: #{tpu_custom_call.1}
  #allocation0 [shape = 'u32[]', space=smem, size = 0x4, offset = 0x4, fixed_abs, tag = 'smem constant byte address 0x4 - core index']
  #allocation1 [shape = 'u32[144,128]{1,0:T(1,128)}', space=vmem, size = 0x12000, scoped, tag = 'internal scratch']
  #allocation2 [shape = 'f32[2,1024]{1,0:T(2,128)}', space=vmem, size = 0x2000, scoped, tag = 'scratch operand']
  %s0 = inlined_call_operand.vmem [shape: f32[2,64,3], index: 0, kind: input, shape index: {}]
  %s1 = inlined_call_operand.vmem [shape: f32[3,64], index: 1, kind: input, shape index: {}]
  %s2 = inlined_call_operand.vmem [shape: f32[1,64], index: 2, kind: input, shape index: {}]
  %s3 = inlined_call_operand.vmem [shape: bf16[64,128], index: 3, kind: input, shape index: {}]
  %s4 = inlined_call_operand.vmem [shape: f32[1,128], index: 4, kind: input, shape index: {}]
  %s5 = inlined_call_operand.hbm [shape: bf16[128,1024], index: 5, kind: input, shape index: {}]
  %s6 = inlined_call_operand.vmem [shape: f32[1,1024], index: 6, kind: input, shape index: {}]
  %s7 = inlined_call_operand.hbm [shape: bf16[1024,128], index: 7, kind: input, shape index: {}]
  %s8 = inlined_call_operand.vmem [shape: f32[1,128], index: 8, kind: input, shape index: {}]
  %s9 = inlined_call_operand.hbm [shape: f32[2,128], index: 9, kind: output, shape index: {}]
  %s10 = sld [smem:[#allocation0]]
  $region62: #{tpu_custom_call.1} parent=0
    _
  %s12 = ssub.s32 1, %s10
  %s13 = scalar_select 0, %s12, %s10
  $region1: #{tpu_custom_call.1} parent=0
    #allocation3 [shape = 'u8[262144]{0}', space=vmem, size = 0x40000, scoped, tag = 'input window, operand 5, single buffered']
    #allocation4 [shape = 's32[1]{0}', space=sflag, size = 0x4, scoped, tag = 'scoped memory for tpu_custom_call.1']
    #allocation5 [shape = 's32[1]{0}', space=sflag, size = 0x4, scoped, tag = 'scoped memory for tpu_custom_call.1']
    #allocation6 [shape = 'u8[262144]{0}', space=vmem, size = 0x40000, scoped, tag = 'input window, operand 7, single buffered']
    #allocation7 [shape = 's32[1]{0}', space=sflag, size = 0x4, scoped, tag = 'scoped memory for tpu_custom_call.1']
    #allocation8 [shape = 'u8[1024]{0}', space=vmem, size = 0x400, scoped, tag = 'output window, operand 0, single buffered']
    %14 = vsyncpa [#allocation4], 0
    %15 = vsyncpa [#allocation7], 0
    %16 = vsyncpa [#allocation5], 0
    // Predicated region
    $region2: #{tpu_custom_call.1} parent=1 // pred_check
      _
    $region3: #{tpu_custom_call.1} parent=1 // pred_check_branch
      %18 = sbr.rel (0) target = $region5
    $region4: #{tpu_custom_call.1} parent=1 // pred_region
      _
    $region5: #{tpu_custom_call.1} parent=1 // pred_fallthru
      _
    // Predicated region
    $region6: #{tpu_custom_call.1} parent=1 // pred_check
      _
    $region7: #{tpu_custom_call.1} parent=1 // pred_check_branch
      %20 = sbr.rel (0) target = $region9
    $region8: #{tpu_custom_call.1} parent=1 // pred_region
      _
    $region9: #{tpu_custom_call.1} parent=1 // pred_fallthru
      _
    // Predicated region
    $region10: #{tpu_custom_call.1} parent=1 // pred_check
      _
    $region11: #{tpu_custom_call.1} parent=1 // pred_check_branch
      %22 = sbr.rel (0) target = $region13
    $region12: #{tpu_custom_call.1} parent=1 // pred_region
      _
    $region13: #{tpu_custom_call.1} parent=1 // pred_fallthru
      _
    // Predicated region
    $region14: #{tpu_custom_call.1} parent=1 // pred_check
      _
    $region15: #{tpu_custom_call.1} parent=1 // pred_check_branch
      %24 = sbr.rel (0) target = $region17
    $region16: #{tpu_custom_call.1} parent=1 // pred_region
      _
    $region17: #{tpu_custom_call.1} parent=1 // pred_fallthru
      _
    // Predicated region
    $region18: #{tpu_custom_call.1} parent=1 // pred_check
      _
    $region19: #{tpu_custom_call.1} parent=1 // pred_check_branch
      %26 = sbr.rel (0) target = $region21
    $region20: #{tpu_custom_call.1} parent=1 // pred_region
      _
    $region21: #{tpu_custom_call.1} parent=1 // pred_fallthru
      _
    // Predicated region
    $region22: #{tpu_custom_call.1} parent=1 // pred_check
      _
    $region23: #{tpu_custom_call.1} parent=1 // pred_check_branch
      %28 = sbr.rel (0) target = $region25
    $region24: #{tpu_custom_call.1} parent=1 // pred_region
      %s30 = ssub.s32 8192, 8192
      %31 = vsyncadd [#allocation4], %s30
      %s32 = sshll.u32 [#allocation3], 4
      %s33 = int_to_ptr.vmem [resolvable:$true] %s32
      %38 = dma.hbm_to_vmem [thread:$0]  %s5, 8192, %s33, [#allocation4], 512, 512, 32
    $region25: #{tpu_custom_call.1} parent=1 // pred_fallthru
      _
    // Predicated region
    $region26: #{tpu_custom_call.1} parent=1 // pred_check
      _
    $region27: #{tpu_custom_call.1} parent=1 // pred_check_branch
      %40 = sbr.rel (0) target = $region29
    $region28: #{tpu_custom_call.1} parent=1 // pred_region
      _
    $region29: #{tpu_custom_call.1} parent=1 // pred_fallthru
      _
    // Predicated region
    $region30: #{tpu_custom_call.1} parent=1 // pred_check
      _
    $region31: #{tpu_custom_call.1} parent=1 // pred_check_branch
      %42 = sbr.rel (0) target = $region33
    $region32: #{tpu_custom_call.1} parent=1 // pred_region
      %s44 = ssub.s32 8192, 8192
      %45 = vsyncadd [#allocation7], %s44
      %s46 = sshll.u32 [#allocation6], 4
      %s47 = int_to_ptr.vmem [resolvable:$true] %s46
      %52 = dma.hbm_to_vmem [thread:$0]  %s7, 8192, %s47, [#allocation7], 64, 64, 4
    $region33: #{tpu_custom_call.1} parent=1 // pred_fallthru
      _
    // Predicated region
    $region34: #{tpu_custom_call.1} parent=1 // pred_check
      _
    $region35: #{tpu_custom_call.1} parent=1 // pred_check_branch
      %54 = sbr.rel (0) target = $region37
    $region36: #{tpu_custom_call.1} parent=1 // pred_region
      _
    $region37: #{tpu_custom_call.1} parent=1 // pred_fallthru
      _
    // Predicated region
    $region38: #{tpu_custom_call.1} parent=1 // pred_check
      _
    $region39: #{tpu_custom_call.1} parent=1 // pred_check_branch
      %56 = sbr.rel (0) target = $region41
    $region40: #{tpu_custom_call.1} parent=1 // pred_region
      %57 = dma.done [#allocation4], 8192
    $region41: #{tpu_custom_call.1} parent=1 // pred_fallthru
      _
    // Predicated region
    $region42: #{tpu_custom_call.1} parent=1 // pred_check
      _
    $region43: #{tpu_custom_call.1} parent=1 // pred_check_branch
      %59 = sbr.rel (0) target = $region45
    $region44: #{tpu_custom_call.1} parent=1 // pred_region
      %60 = dma.done [#allocation7], 8192
    $region45: #{tpu_custom_call.1} parent=1 // pred_fallthru
      _
    %p62 = scmp.eq.s32.totalorder 0, 0
    // Predicated region
    $region46: #{tpu_custom_call.1} parent=1 // pred_check
      %p63 = pneg %p62
    $region47: #{tpu_custom_call.1} parent=1 // pred_check_branch
      %65 = sbr.rel (%p63) target = $region49
    $region48: #{tpu_custom_call.1} parent=1 // pred_region
      %66 = vst [vmem:[#allocation2] sm:$0xff] -inf
      %67 = vst [vmem:[#allocation2 + $0x8] sm:$0xff] -inf
    $region49: #{tpu_custom_call.1} parent=1 // pred_fallthru
      _
    %v68 = vld [vmem:[%s0] sm:$0xff]
    %v69 = vld [vmem:[%s0 + $0x8] sm:$0xff]
    %v70 = vld [vmem:[%s0 + $0x10] sm:$0xff]
    %v71 = vld [vmem:[%s0 + $0x18] sm:$0xff]
    %v72 = vld [vmem:[%s0 + $0x20] sm:$0xff]
    %v73 = vld [vmem:[%s0 + $0x28] sm:$0xff]
    %v74 = vld [vmem:[%s0 + $0x30] sm:$0xff]
    %v75 = vld [vmem:[%s0 + $0x38] sm:$0xff]
    %v76 = vld [vmem:[%s0 + $0x40] sm:$0xff]
    %v77 = vld [vmem:[%s0 + $0x48] sm:$0xff]
    %v78 = vld [vmem:[%s0 + $0x50] sm:$0xff]
    %v79 = vld [vmem:[%s0 + $0x58] sm:$0xff]
    %v80 = vld [vmem:[%s0 + $0x60] sm:$0xff]
    %v81 = vld [vmem:[%s0 + $0x68] sm:$0xff]
    %v82 = vld [vmem:[%s0 + $0x70] sm:$0xff]
    %v83 = vld [vmem:[%s0 + $0x78] sm:$0xff]
    %v84 = vld [vmem:[%s1] sm:$0x7]
    %86 = vset.pattern.permute.xlu0 0
    %87 = vperm.xlu0 %86, %v68
    %v88 = vpop.permute.xlu0 %87
    %91 = vset.pattern.permute.xlu0 0
    %92 = vperm.xlu0 %91, %v69
    %v93 = vpop.permute.xlu0 %92
    %96 = vset.pattern.permute.xlu0 0
    %97 = vperm.xlu0 %96, %v70
    %v98 = vpop.permute.xlu0 %97
    %101 = vset.pattern.permute.xlu0 0
    %102 = vperm.xlu0 %101, %v71
    %v103 = vpop.permute.xlu0 %102
    %106 = vset.pattern.permute.xlu0 0
    %107 = vperm.xlu0 %106, %v72
    %v108 = vpop.permute.xlu0 %107
    %111 = vset.pattern.permute.xlu0 0
    %112 = vperm.xlu0 %111, %v73
    %v113 = vpop.permute.xlu0 %112
    %116 = vset.pattern.permute.xlu0 0
    %117 = vperm.xlu0 %116, %v74
    %v118 = vpop.permute.xlu0 %117
    %121 = vset.pattern.permute.xlu0 0
    %122 = vperm.xlu0 %121, %v75
    %v123 = vpop.permute.xlu0 %122
    %126 = vset.pattern.permute.xlu0 0
    %127 = vperm.xlu0 %126, %v76
    %v128 = vpop.permute.xlu0 %127
    %131 = vset.pattern.permute.xlu0 0
    %132 = vperm.xlu0 %131, %v77
    %v133 = vpop.permute.xlu0 %132
    %136 = vset.pattern.permute.xlu0 0
    %137 = vperm.xlu0 %136, %v78
    %v138 = vpop.permute.xlu0 %137
    %141 = vset.pattern.permute.xlu0 0
    %142 = vperm.xlu0 %141, %v79
    %v143 = vpop.permute.xlu0 %142
    %146 = vset.pattern.permute.xlu0 0
    %147 = vperm.xlu0 %146, %v80
    %v148 = vpop.permute.xlu0 %147
    %151 = vset.pattern.permute.xlu0 0
    %152 = vperm.xlu0 %151, %v81
    %v153 = vpop.permute.xlu0 %152
    %156 = vset.pattern.permute.xlu0 0
    %157 = vperm.xlu0 %156, %v82
    %v158 = vpop.permute.xlu0 %157
    %161 = vset.pattern.permute.xlu0 0
    %162 = vperm.xlu0 %161, %v83
    %v163 = vpop.permute.xlu0 %162
    %v165 = vlaneseq
    %v166 = vshrl.u32 %v165, 7
    %v167 = vsub.s32 0, %v166
    %v168 = vrot.slane %v84, %v167
    %v169 = vmul.f32 %v88, %v168
    %v170 = vmul.f32 %v93, %v168
    %v171 = vmul.f32 %v98, %v168
    %v172 = vmul.f32 %v103, %v168
    %v173 = vmul.f32 %v108, %v168
    %v174 = vmul.f32 %v113, %v168
    %v175 = vmul.f32 %v118, %v168
    %v176 = vmul.f32 %v123, %v168
    %v177 = vmul.f32 %v128, %v168
    %v178 = vmul.f32 %v133, %v168
    %v179 = vmul.f32 %v138, %v168
    %v180 = vmul.f32 %v143, %v168
    %v181 = vmul.f32 %v148, %v168
    %v182 = vmul.f32 %v153, %v168
    %v183 = vmul.f32 %v158, %v168
    %v184 = vmul.f32 %v163, %v168
    %185 = vset.pattern.permute.xlu0 1
    %186 = vperm.xlu0 %185, %v68
    %v187 = vpop.permute.xlu0 %186
    %189 = vset.pattern.permute.xlu0 1
    %190 = vperm.xlu0 %189, %v69
    %v191 = vpop.permute.xlu0 %190
    %193 = vset.pattern.permute.xlu0 1
    %194 = vperm.xlu0 %193, %v70
    %v195 = vpop.permute.xlu0 %194
    %197 = vset.pattern.permute.xlu0 1
    %198 = vperm.xlu0 %197, %v71
    %v199 = vpop.permute.xlu0 %198
    %201 = vset.pattern.permute.xlu0 1
    %202 = vperm.xlu0 %201, %v72
    %v203 = vpop.permute.xlu0 %202
    %205 = vset.pattern.permute.xlu0 1
    %206 = vperm.xlu0 %205, %v73
    %v207 = vpop.permute.xlu0 %206
    %209 = vset.pattern.permute.xlu0 1
    %210 = vperm.xlu0 %209, %v74
    %v211 = vpop.permute.xlu0 %210
    %213 = vset.pattern.permute.xlu0 1
    %214 = vperm.xlu0 %213, %v75
    %v215 = vpop.permute.xlu0 %214
    %217 = vset.pattern.permute.xlu0 1
    %218 = vperm.xlu0 %217, %v76
    %v219 = vpop.permute.xlu0 %218
    %221 = vset.pattern.permute.xlu0 1
    %222 = vperm.xlu0 %221, %v77
    %v223 = vpop.permute.xlu0 %222
    %225 = vset.pattern.permute.xlu0 1
    %226 = vperm.xlu0 %225, %v78
    %v227 = vpop.permute.xlu0 %226
    %229 = vset.pattern.permute.xlu0 1
    %230 = vperm.xlu0 %229, %v79
    %v231 = vpop.permute.xlu0 %230
    %233 = vset.pattern.permute.xlu0 1
    %234 = vperm.xlu0 %233, %v80
    %v235 = vpop.permute.xlu0 %234
    %237 = vset.pattern.permute.xlu0 1
    %238 = vperm.xlu0 %237, %v81
    %v239 = vpop.permute.xlu0 %238
    %241 = vset.pattern.permute.xlu0 1
    %242 = vperm.xlu0 %241, %v82
    %v243 = vpop.permute.xlu0 %242
    %245 = vset.pattern.permute.xlu0 1
    %246 = vperm.xlu0 %245, %v83
    %v247 = vpop.permute.xlu0 %246
    %v249 = vlaneseq
    %v250 = vshrl.u32 %v249, 7
    %v251 = vsub.s32 1, %v250
    %v252 = vrot.slane %v84, %v251
    %v253 = vmul.f32 %v187, %v252
    %v254 = vmul.f32 %v191, %v252
    %v255 = vmul.f32 %v195, %v252
    %v256 = vmul.f32 %v199, %v252
    %v257 = vmul.f32 %v203, %v252
    %v258 = vmul.f32 %v207, %v252
    %v259 = vmul.f32 %v211, %v252
    %v260 = vmul.f32 %v215, %v252
    %v261 = vmul.f32 %v219, %v252
    %v262 = vmul.f32 %v223, %v252
    %v263 = vmul.f32 %v227, %v252
    %v264 = vmul.f32 %v231, %v252
    %v265 = vmul.f32 %v235, %v252
    %v266 = vmul.f32 %v239, %v252
    %v267 = vmul.f32 %v243, %v252
    %v268 = vmul.f32 %v247, %v252
    %v269 = vadd.f32 %v169, %v253
    %v270 = vadd.f32 %v170, %v254
    %v271 = vadd.f32 %v171, %v255
    %v272 = vadd.f32 %v172, %v256
    %v273 = vadd.f32 %v173, %v257
    %v274 = vadd.f32 %v174, %v258
    %v275 = vadd.f32 %v175, %v259
    %v276 = vadd.f32 %v176, %v260
    %v277 = vadd.f32 %v177, %v261
    %v278 = vadd.f32 %v178, %v262
    %v279 = vadd.f32 %v179, %v263
    %v280 = vadd.f32 %v180, %v264
    %v281 = vadd.f32 %v181, %v265
    %v282 = vadd.f32 %v182, %v266
    %v283 = vadd.f32 %v183, %v267
    %v284 = vadd.f32 %v184, %v268
    %285 = vset.pattern.permute.xlu0 2
    %286 = vperm.xlu0 %285, %v68
    %v287 = vpop.permute.xlu0 %286
    %289 = vset.pattern.permute.xlu0 2
    %290 = vperm.xlu0 %289, %v69
    %v291 = vpop.permute.xlu0 %290
    %293 = vset.pattern.permute.xlu0 2
    %294 = vperm.xlu0 %293, %v70
    %v295 = vpop.permute.xlu0 %294
    %297 = vset.pattern.permute.xlu0 2
    %298 = vperm.xlu0 %297, %v71
    %v299 = vpop.permute.xlu0 %298
    %301 = vset.pattern.permute.xlu0 2
    %302 = vperm.xlu0 %301, %v72
    %v303 = vpop.permute.xlu0 %302
    %305 = vset.pattern.permute.xlu0 2
    %306 = vperm.xlu0 %305, %v73
    %v307 = vpop.permute.xlu0 %306
    %309 = vset.pattern.permute.xlu0 2
    %310 = vperm.xlu0 %309, %v74
    %v311 = vpop.permute.xlu0 %310
    %313 = vset.pattern.permute.xlu0 2
    %314 = vperm.xlu0 %313, %v75
    %v315 = vpop.permute.xlu0 %314
    %317 = vset.pattern.permute.xlu0 2
    %318 = vperm.xlu0 %317, %v76
    %v319 = vpop.permute.xlu0 %318
    %321 = vset.pattern.permute.xlu0 2
    %322 = vperm.xlu0 %321, %v77
    %v323 = vpop.permute.xlu0 %322
    %325 = vset.pattern.permute.xlu0 2
    %326 = vperm.xlu0 %325, %v78
    %v327 = vpop.permute.xlu0 %326
    %329 = vset.pattern.permute.xlu0 2
    %330 = vperm.xlu0 %329, %v79
    %v331 = vpop.permute.xlu0 %330
    %333 = vset.pattern.permute.xlu0 2
    %334 = vperm.xlu0 %333, %v80
    %v335 = vpop.permute.xlu0 %334
    %337 = vset.pattern.permute.xlu0 2
    %338 = vperm.xlu0 %337, %v81
    %v339 = vpop.permute.xlu0 %338
    %341 = vset.pattern.permute.xlu0 2
    %342 = vperm.xlu0 %341, %v82
    %v343 = vpop.permute.xlu0 %342
    %345 = vset.pattern.permute.xlu0 2
    %346 = vperm.xlu0 %345, %v83
    %v347 = vpop.permute.xlu0 %346
    %v349 = vlaneseq
    %v350 = vshrl.u32 %v349, 7
    %v351 = vsub.s32 2, %v350
    %v352 = vrot.slane %v84, %v351
    %v353 = vmul.f32 %v287, %v352
    %v354 = vmul.f32 %v291, %v352
    %v355 = vmul.f32 %v295, %v352
    %v356 = vmul.f32 %v299, %v352
    %v357 = vmul.f32 %v303, %v352
    %v358 = vmul.f32 %v307, %v352
    %v359 = vmul.f32 %v311, %v352
    %v360 = vmul.f32 %v315, %v352
    %v361 = vmul.f32 %v319, %v352
    %v362 = vmul.f32 %v323, %v352
    %v363 = vmul.f32 %v327, %v352
    %v364 = vmul.f32 %v331, %v352
    %v365 = vmul.f32 %v335, %v352
    %v366 = vmul.f32 %v339, %v352
    %v367 = vmul.f32 %v343, %v352
    %v368 = vmul.f32 %v347, %v352
    %v369 = vadd.f32 %v269, %v353
    %v370 = vadd.f32 %v270, %v354
    %v371 = vadd.f32 %v271, %v355
    %v372 = vadd.f32 %v272, %v356
    %v373 = vadd.f32 %v273, %v357
    %v374 = vadd.f32 %v274, %v358
    %v375 = vadd.f32 %v275, %v359
    %v376 = vadd.f32 %v276, %v360
    %v377 = vadd.f32 %v277, %v361
    %v378 = vadd.f32 %v278, %v362
    %v379 = vadd.f32 %v279, %v363
    %v380 = vadd.f32 %v280, %v364
    %v381 = vadd.f32 %v281, %v365
    %v382 = vadd.f32 %v282, %v366
    %v383 = vadd.f32 %v283, %v367
    %v384 = vadd.f32 %v284, %v368
    %v385 = vld [vmem:[%s2] sm:$0x1]
    %v387 = vlaneseq
    %v388 = vshrl.u32 %v387, 7
    %v389 = vsub.s32 0, %v388
    %v390 = vrot.slane %v385, %v389
    %v392 = vadd.f32 %v369, %v390
    %v393 = vadd.f32 %v370, %v390
    %v394 = vadd.f32 %v371, %v390
    %v395 = vadd.f32 %v372, %v390
    %v396 = vadd.f32 %v373, %v390
    %v397 = vadd.f32 %v374, %v390
    %v398 = vadd.f32 %v375, %v390
    %v399 = vadd.f32 %v376, %v390
    %v400 = vadd.f32 %v377, %v390
    %v401 = vadd.f32 %v378, %v390
    %v402 = vadd.f32 %v379, %v390
    %v403 = vadd.f32 %v380, %v390
    %v404 = vadd.f32 %v381, %v390
    %v405 = vadd.f32 %v382, %v390
    %v406 = vadd.f32 %v383, %v390
    %v407 = vadd.f32 %v384, %v390
    %v408 = vmax.f32 %v392, 0.0
    %v409 = vmax.f32 %v393, 0.0
    %v410 = vmax.f32 %v394, 0.0
    %v411 = vmax.f32 %v395, 0.0
    %v412 = vmax.f32 %v396, 0.0
    %v413 = vmax.f32 %v397, 0.0
    %v414 = vmax.f32 %v398, 0.0
    %v415 = vmax.f32 %v399, 0.0
    %v416 = vmax.f32 %v400, 0.0
    %v417 = vmax.f32 %v401, 0.0
    %v418 = vmax.f32 %v402, 0.0
    %v419 = vmax.f32 %v403, 0.0
    %v420 = vmax.f32 %v404, 0.0
    %v421 = vmax.f32 %v405, 0.0
    %v422 = vmax.f32 %v406, 0.0
    %v423 = vmax.f32 %v407, 0.0
    %v424 = vpack.c.bf16 %v409, %v408
    %v425 = vpack.c.bf16 %v411, %v410
    %v426 = vpack.c.bf16 %v413, %v412
    %v427 = vpack.c.bf16 %v415, %v414
    %v428 = vpack.c.bf16 %v417, %v416
    %v429 = vpack.c.bf16 %v419, %v418
    %v430 = vpack.c.bf16 %v421, %v420
    %v431 = vpack.c.bf16 %v423, %v422
    %v432 = vld [vmem:[%s3] sm:$0xf]
    %v433 = vld [vmem:[%s3 + $0x4] sm:$0xf]
    %v434 = vld [vmem:[%s3 + $0x8] sm:$0xf]
    %v435 = vld [vmem:[%s3 + $0xc] sm:$0xf]
    %v436 = vld [vmem:[%s3 + $0x10] sm:$0xf]
    %v437 = vld [vmem:[%s3 + $0x14] sm:$0xf]
    %v438 = vld [vmem:[%s3 + $0x18] sm:$0xf]
    %v439 = vld [vmem:[%s3 + $0x1c] sm:$0xf]
    %v440 = vld [vmem:[%s4] sm:$0x1]
    %v442 = vlaneseq
    %v443 = vshrl.u32 %v442, 7
    %v444 = vsub.s32 0, %v443
    %v445 = vrot.slane %v440, %v444
    %v455 = vunpack.c.l.b16 %v432
    %v456 = vunpack.c.l.b16 %v433
    %v457 = vunpack.c.l.b16 %v434
    %v458 = vunpack.c.l.b16 %v435
    %v459 = vunpack.c.l.b16 %v436
    %v460 = vunpack.c.l.b16 %v437
    %v461 = vunpack.c.l.b16 %v438
    %v462 = vunpack.c.l.b16 %v439
    %v463 = vpack.c.b16 %v456, %v455
    %v464 = vpack.c.b16 %v458, %v457
    %v465 = vpack.c.b16 %v460, %v459
    %v466 = vpack.c.b16 %v462, %v461
    %vm471 = vcmask 523264
    %v473 = vsel %vm471, %v424, 0
    %v476 = vsel %vm471, %v425, 0
    %v479 = vsel %vm471, %v426, 0
    %v482 = vsel %vm471, %v427, 0
    %v485 = vsel %vm471, %v428, 0
    %v488 = vsel %vm471, %v429, 0
    %v491 = vsel %vm471, %v430, 0
    %v494 = vsel %vm471, %v431, 0
    %496 = vmatprep.subr.bf16.mxu0 0
    %497 = vmatpush1.bf16.msra.mxu0 %v463
    %498 = vmatprep.subr.bf16.mxu0 0
    %499 = vmatpush1.bf16.msra.mxu0 %v464
    %500 = vmatprep.subr.bf16.mxu0 0
    %501 = vmatpush1.bf16.msra.mxu0 %v465
    %502 = vmatprep.subr.bf16.mxu0 0
    %503 = vmatpush1.bf16.msra.mxu0 %v466
    %504 = vmatprep.subr.bf16.mxu0 0
    %505 = vmatpush1.bf16.msra.mxu0 0
    %506 = vmatprep.subr.bf16.mxu0 0
    %507 = vmatpush1.bf16.msra.mxu0 0
    %508 = vmatprep.subr.bf16.mxu0 0
    %509 = vmatpush1.bf16.msra.mxu0 0
    %510 = vmatprep.subr.bf16.mxu0 0
    %511 = vmatpush1.bf16.msra.mxu0 0
    %512 = vmatprep.subr.bf16.mxu0 0
    %513 = vmatpush1.bf16.msra.mxu0 0
    %514 = vmatprep.subr.bf16.mxu0 0
    %515 = vmatpush1.bf16.msra.mxu0 0
    %516 = vmatprep.subr.bf16.mxu0 0
    %517 = vmatpush1.bf16.msra.mxu0 0
    %518 = vmatprep.subr.bf16.mxu0 0
    %519 = vmatpush1.bf16.msra.mxu0 0
    %520 = vmatprep.subr.bf16.mxu0 0
    %521 = vmatpush1.bf16.msra.mxu0 0
    %522 = vmatprep.subr.bf16.mxu0 0
    %523 = vmatpush1.bf16.msra.mxu0 0
    %524 = vmatprep.subr.bf16.mxu0 0
    %525 = vmatpush1.bf16.msra.mxu0 0
    %526 = vmatprep.subr.bf16.mxu0 0
    %527 = vmatpush1.bf16.msra.mxu0 0
    %528 = vmatprep.mubr.bf16.mxu0 0
    %529 = vmatmul.mubr.bf16.gmra.mrb[0].mxu0 %v473
    %v530 = vpop.f32.mrb[0].mxu0
    %v531 = vadd.f32 %v445, %v530
    %v532 = vpop.f32.mrb[0].mxu0
    %v533 = vpop.f32.mrb[0].mxu0
    %v534 = vadd.f32 %v445, %v533
    %v535 = vpop.f32.mrb[0].mxu0
    %536 = vmatprep.mubr.bf16.mxu0 0
    %537 = vmatmul.mubr.bf16.gmra.mrb[0].mxu0 %v476
    %v538 = vpop.f32.mrb[0].mxu0
    %v539 = vadd.f32 %v445, %v538
    %v540 = vpop.f32.mrb[0].mxu0
    %v541 = vpop.f32.mrb[0].mxu0
    %v542 = vadd.f32 %v445, %v541
    %v543 = vpop.f32.mrb[0].mxu0
    %544 = vmatprep.mubr.bf16.mxu0 0
    %545 = vmatmul.mubr.bf16.gmra.mrb[0].mxu0 %v479
    %v546 = vpop.f32.mrb[0].mxu0
    %v547 = vadd.f32 %v445, %v546
    %v548 = vpop.f32.mrb[0].mxu0
    %v549 = vpop.f32.mrb[0].mxu0
    %v550 = vadd.f32 %v445, %v549
    %v551 = vpop.f32.mrb[0].mxu0
    %552 = vmatprep.mubr.bf16.mxu0 0
    %553 = vmatmul.mubr.bf16.gmra.mrb[0].mxu0 %v482
    %v554 = vpop.f32.mrb[0].mxu0
    %v555 = vadd.f32 %v445, %v554
    %v556 = vpop.f32.mrb[0].mxu0
    %v557 = vpop.f32.mrb[0].mxu0
    %v558 = vadd.f32 %v445, %v557
    %v559 = vpop.f32.mrb[0].mxu0
    %560 = vmatprep.mubr.bf16.mxu0 0
    %561 = vmatmul.mubr.bf16.gmra.mrb[0].mxu0 %v485
    %v562 = vpop.f32.mrb[0].mxu0
    %v563 = vadd.f32 %v445, %v562
    %v564 = vpop.f32.mrb[0].mxu0
    %v565 = vpop.f32.mrb[0].mxu0
    %v566 = vadd.f32 %v445, %v565
    %v567 = vpop.f32.mrb[0].mxu0
    %568 = vmatprep.mubr.bf16.mxu0 0
    %569 = vmatmul.mubr.bf16.gmra.mrb[0].mxu0 %v488
    %v570 = vpop.f32.mrb[0].mxu0
    %v571 = vadd.f32 %v445, %v570
    %v572 = vpop.f32.mrb[0].mxu0
    %v573 = vpop.f32.mrb[0].mxu0
    %v574 = vadd.f32 %v445, %v573
    %v575 = vpop.f32.mrb[0].mxu0
    %576 = vmatprep.mubr.bf16.mxu0 0
    %577 = vmatmul.mubr.bf16.gmra.mrb[0].mxu0 %v491
    %v578 = vpop.f32.mrb[0].mxu0
    %v579 = vadd.f32 %v445, %v578
    %v580 = vpop.f32.mrb[0].mxu0
    %v581 = vpop.f32.mrb[0].mxu0
    %v582 = vadd.f32 %v445, %v581
    %v583 = vpop.f32.mrb[0].mxu0
    %584 = vmatprep.mubr.bf16.mxu0 0
    %585 = vmatmul.mubr.bf16.gmra.mrb[0].mxu0 %v494
    %v586 = vpop.f32.mrb[0].mxu0
    %v587 = vadd.f32 %v445, %v586
    %v588 = vpop.f32.mrb[0].mxu0
    %v589 = vpop.f32.mrb[0].mxu0
    %v590 = vadd.f32 %v445, %v589
    %v591 = vpop.f32.mrb[0].mxu0
    %592 = vdwg.mxu0
    %v593 = vmax.f32 %v531, 0.0
    %v594 = vmax.f32 %v534, 0.0
    %v595 = vmax.f32 %v539, 0.0
    %v596 = vmax.f32 %v542, 0.0
    %v597 = vmax.f32 %v547, 0.0
    %v598 = vmax.f32 %v550, 0.0
    %v599 = vmax.f32 %v555, 0.0
    %v600 = vmax.f32 %v558, 0.0
    %v601 = vmax.f32 %v563, 0.0
    %v602 = vmax.f32 %v566, 0.0
    %v603 = vmax.f32 %v571, 0.0
    %v604 = vmax.f32 %v574, 0.0
    %v605 = vmax.f32 %v579, 0.0
    %v606 = vmax.f32 %v582, 0.0
    %v607 = vmax.f32 %v587, 0.0
    %v608 = vmax.f32 %v590, 0.0
    %v609 = vpack.c.bf16 %v594, %v593
    %v610 = vpack.c.bf16 %v596, %v595
    %v611 = vpack.c.bf16 %v598, %v597
    %v612 = vpack.c.bf16 %v600, %v599
    %v613 = vpack.c.bf16 %v602, %v601
    %v614 = vpack.c.bf16 %v604, %v603
    %v615 = vpack.c.bf16 %v606, %v605
    %v616 = vpack.c.bf16 %v608, %v607
    %v617 = vld [vmem:[#allocation3] sm:$0xff]
    %v618 = vld [vmem:[#allocation3 + $0x8] sm:$0xff]
    %v619 = vld [vmem:[#allocation3 + $0x10] sm:$0xff]
    %v620 = vld [vmem:[#allocation3 + $0x18] sm:$0xff]
    %v621 = vld [vmem:[#allocation3 + $0x20] sm:$0xff]
    %v622 = vld [vmem:[#allocation3 + $0x28] sm:$0xff]
    %v623 = vld [vmem:[#allocation3 + $0x30] sm:$0xff]
    %v624 = vld [vmem:[#allocation3 + $0x38] sm:$0xff]
    %v625 = vld [vmem:[#allocation3 + $0x40] sm:$0xff]
    %v626 = vld [vmem:[#allocation3 + $0x48] sm:$0xff]
    %v627 = vld [vmem:[#allocation3 + $0x50] sm:$0xff]
    %v628 = vld [vmem:[#allocation3 + $0x58] sm:$0xff]
    %v629 = vld [vmem:[#allocation3 + $0x60] sm:$0xff]
    %v630 = vld [vmem:[#allocation3 + $0x68] sm:$0xff]
    %v631 = vld [vmem:[#allocation3 + $0x70] sm:$0xff]
    %v632 = vld [vmem:[#allocation3 + $0x78] sm:$0xff]
    %v633 = vld [vmem:[#allocation3 + $0x80] sm:$0xff]
    %v634 = vld [vmem:[#allocation3 + $0x88] sm:$0xff]
    %v635 = vld [vmem:[#allocation3 + $0x90] sm:$0xff]
    %v636 = vld [vmem:[#allocation3 + $0x98] sm:$0xff]
    %v637 = vld [vmem:[#allocation3 + $0xa0] sm:$0xff]
    %v638 = vld [vmem:[#allocation3 + $0xa8] sm:$0xff]
    %v639 = vld [vmem:[#allocation3 + $0xb0] sm:$0xff]
    %v640 = vld [vmem:[#allocation3 + $0xb8] sm:$0xff]
    %v641 = vld [vmem:[#allocation3 + $0xc0] sm:$0xff]
    %v642 = vld [vmem:[#allocation3 + $0xc8] sm:$0xff]
    %v643 = vld [vmem:[#allocation3 + $0xd0] sm:$0xff]
    %v644 = vld [vmem:[#allocation3 + $0xd8] sm:$0xff]
    %v645 = vld [vmem:[#allocation3 + $0xe0] sm:$0xff]
    %v646 = vld [vmem:[#allocation3 + $0xe8] sm:$0xff]
    %v647 = vld [vmem:[#allocation3 + $0xf0] sm:$0xff]
    %v648 = vld [vmem:[#allocation3 + $0xf8] sm:$0xff]
    %v649 = vld [vmem:[#allocation3 + $0x100] sm:$0xff]
    %v650 = vld [vmem:[#allocation3 + $0x108] sm:$0xff]
    %v651 = vld [vmem:[#allocation3 + $0x110] sm:$0xff]
    %v652 = vld [vmem:[#allocation3 + $0x118] sm:$0xff]
    %v653 = vld [vmem:[#allocation3 + $0x120] sm:$0xff]
    %v654 = vld [vmem:[#allocation3 + $0x128] sm:$0xff]
    %v655 = vld [vmem:[#allocation3 + $0x130] sm:$0xff]
    %v656 = vld [vmem:[#allocation3 + $0x138] sm:$0xff]
    %v657 = vld [vmem:[#allocation3 + $0x140] sm:$0xff]
    %v658 = vld [vmem:[#allocation3 + $0x148] sm:$0xff]
    %v659 = vld [vmem:[#allocation3 + $0x150] sm:$0xff]
    %v660 = vld [vmem:[#allocation3 + $0x158] sm:$0xff]
    %v661 = vld [vmem:[#allocation3 + $0x160] sm:$0xff]
    %v662 = vld [vmem:[#allocation3 + $0x168] sm:$0xff]
    %v663 = vld [vmem:[#allocation3 + $0x170] sm:$0xff]
    %v664 = vld [vmem:[#allocation3 + $0x178] sm:$0xff]
    %v665 = vld [vmem:[#allocation3 + $0x180] sm:$0xff]
    %v666 = vld [vmem:[#allocation3 + $0x188] sm:$0xff]
    %v667 = vld [vmem:[#allocation3 + $0x190] sm:$0xff]
    %v668 = vld [vmem:[#allocation3 + $0x198] sm:$0xff]
    %v669 = vld [vmem:[#allocation3 + $0x1a0] sm:$0xff]
    %v670 = vld [vmem:[#allocation3 + $0x1a8] sm:$0xff]
    %v671 = vld [vmem:[#allocation3 + $0x1b0] sm:$0xff]
    %v672 = vld [vmem:[#allocation3 + $0x1b8] sm:$0xff]
    %v673 = vld [vmem:[#allocation3 + $0x1c0] sm:$0xff]
    %v674 = vld [vmem:[#allocation3 + $0x1c8] sm:$0xff]
    %v675 = vld [vmem:[#allocation3 + $0x1d0] sm:$0xff]
    %v676 = vld [vmem:[#allocation3 + $0x1d8] sm:$0xff]
    %v677 = vld [vmem:[#allocation3 + $0x1e0] sm:$0xff]
    %v678 = vld [vmem:[#allocation3 + $0x1e8] sm:$0xff]
    %v679 = vld [vmem:[#allocation3 + $0x1f0] sm:$0xff]
    %v680 = vld [vmem:[#allocation3 + $0x1f8] sm:$0xff]
    %v681 = vld [vmem:[%s6] sm:$0xff]
    %v683 = vlaneseq
    %v684 = vshrl.u32 %v683, 7
    %v685 = vsub.s32 0, %v684
    %v686 = vrot.slane %v681, %v685
    %v687 = vlaneseq
    %v688 = vshrl.u32 %v687, 7
    %v689 = vsub.s32 1, %v688
    %v690 = vrot.slane %v681, %v689
    %v691 = vlaneseq
    %v692 = vshrl.u32 %v691, 7
    %v693 = vsub.s32 2, %v692
    %v694 = vrot.slane %v681, %v693
    %v695 = vlaneseq
    %v696 = vshrl.u32 %v695, 7
    %v697 = vsub.s32 3, %v696
    %v698 = vrot.slane %v681, %v697
    %v699 = vlaneseq
    %v700 = vshrl.u32 %v699, 7
    %v701 = vsub.s32 4, %v700
    %v702 = vrot.slane %v681, %v701
    %v703 = vlaneseq
    %v704 = vshrl.u32 %v703, 7
    %v705 = vsub.s32 5, %v704
    %v706 = vrot.slane %v681, %v705
    %v707 = vlaneseq
    %v708 = vshrl.u32 %v707, 7
    %v709 = vsub.s32 6, %v708
    %v710 = vrot.slane %v681, %v709
    %v711 = vlaneseq
    %v712 = vshrl.u32 %v711, 7
    %v713 = vsub.s32 7, %v712
    %v714 = vrot.slane %v681, %v713
    %v787 = vunpack.c.l.b16 %v617
    %v788 = vunpack.c.h.b16 %v617
    %v789 = vunpack.c.l.b16 %v618
    %v790 = vunpack.c.h.b16 %v618
    %v791 = vunpack.c.l.b16 %v619
    %v792 = vunpack.c.h.b16 %v619
    %v793 = vunpack.c.l.b16 %v620
    %v794 = vunpack.c.h.b16 %v620
    %v795 = vunpack.c.l.b16 %v621
    %v796 = vunpack.c.h.b16 %v621
    %v797 = vunpack.c.l.b16 %v622
    %v798 = vunpack.c.h.b16 %v622
    %v799 = vunpack.c.l.b16 %v623
    %v800 = vunpack.c.h.b16 %v623
    %v801 = vunpack.c.l.b16 %v624
    %v802 = vunpack.c.h.b16 %v624
    %v803 = vunpack.c.l.b16 %v625
    %v804 = vunpack.c.h.b16 %v625
    %v805 = vunpack.c.l.b16 %v626
    %v806 = vunpack.c.h.b16 %v626
    %v807 = vunpack.c.l.b16 %v627
    %v808 = vunpack.c.h.b16 %v627
    %v809 = vunpack.c.l.b16 %v628
    %v810 = vunpack.c.h.b16 %v628
    %v811 = vunpack.c.l.b16 %v629
    %v812 = vunpack.c.h.b16 %v629
    %v813 = vunpack.c.l.b16 %v630
    %v814 = vunpack.c.h.b16 %v630
    %v815 = vunpack.c.l.b16 %v631
    %v816 = vunpack.c.h.b16 %v631
    %v817 = vunpack.c.l.b16 %v632
    %v818 = vunpack.c.h.b16 %v632
    %v819 = vunpack.c.l.b16 %v633
    %v820 = vunpack.c.h.b16 %v633
    %v821 = vunpack.c.l.b16 %v634
    %v822 = vunpack.c.h.b16 %v634
    %v823 = vunpack.c.l.b16 %v635
    %v824 = vunpack.c.h.b16 %v635
    %v825 = vunpack.c.l.b16 %v636
    %v826 = vunpack.c.h.b16 %v636
    %v827 = vunpack.c.l.b16 %v637
    %v828 = vunpack.c.h.b16 %v637
    %v829 = vunpack.c.l.b16 %v638
    %v830 = vunpack.c.h.b16 %v638
    %v831 = vunpack.c.l.b16 %v639
    %v832 = vunpack.c.h.b16 %v639
    %v833 = vunpack.c.l.b16 %v640
    %v834 = vunpack.c.h.b16 %v640
    %v835 = vunpack.c.l.b16 %v641
    %v836 = vunpack.c.h.b16 %v641
    %v837 = vunpack.c.l.b16 %v642
    %v838 = vunpack.c.h.b16 %v642
    %v839 = vunpack.c.l.b16 %v643
    %v840 = vunpack.c.h.b16 %v643
    %v841 = vunpack.c.l.b16 %v644
    %v842 = vunpack.c.h.b16 %v644
    %v843 = vunpack.c.l.b16 %v645
    %v844 = vunpack.c.h.b16 %v645
    %v845 = vunpack.c.l.b16 %v646
    %v846 = vunpack.c.h.b16 %v646
    %v847 = vunpack.c.l.b16 %v647
    %v848 = vunpack.c.h.b16 %v647
    %v849 = vunpack.c.l.b16 %v648
    %v850 = vunpack.c.h.b16 %v648
    %v851 = vunpack.c.l.b16 %v649
    %v852 = vunpack.c.h.b16 %v649
    %v853 = vunpack.c.l.b16 %v650
    %v854 = vunpack.c.h.b16 %v650
    %v855 = vunpack.c.l.b16 %v651
    %v856 = vunpack.c.h.b16 %v651
    %v857 = vunpack.c.l.b16 %v652
    %v858 = vunpack.c.h.b16 %v652
    %v859 = vunpack.c.l.b16 %v653
    %v860 = vunpack.c.h.b16 %v653
    %v861 = vunpack.c.l.b16 %v654
    %v862 = vunpack.c.h.b16 %v654
    %v863 = vunpack.c.l.b16 %v655
    %v864 = vunpack.c.h.b16 %v655
    %v865 = vunpack.c.l.b16 %v656
    %v866 = vunpack.c.h.b16 %v656
    %v867 = vunpack.c.l.b16 %v657
    %v868 = vunpack.c.h.b16 %v657
    %v869 = vunpack.c.l.b16 %v658
    %v870 = vunpack.c.h.b16 %v658
    %v871 = vunpack.c.l.b16 %v659
    %v872 = vunpack.c.h.b16 %v659
    %v873 = vunpack.c.l.b16 %v660
    %v874 = vunpack.c.h.b16 %v660
    %v875 = vunpack.c.l.b16 %v661
    %v876 = vunpack.c.h.b16 %v661
    %v877 = vunpack.c.l.b16 %v662
    %v878 = vunpack.c.h.b16 %v662
    %v879 = vunpack.c.l.b16 %v663
    %v880 = vunpack.c.h.b16 %v663
    %v881 = vunpack.c.l.b16 %v664
    %v882 = vunpack.c.h.b16 %v664
    %v883 = vunpack.c.l.b16 %v665
    %v884 = vunpack.c.h.b16 %v665
    %v885 = vunpack.c.l.b16 %v666
    %v886 = vunpack.c.h.b16 %v666
    %v887 = vunpack.c.l.b16 %v667
    %v888 = vunpack.c.h.b16 %v667
    %v889 = vunpack.c.l.b16 %v668
    %v890 = vunpack.c.h.b16 %v668
    %v891 = vunpack.c.l.b16 %v669
    %v892 = vunpack.c.h.b16 %v669
    %v893 = vunpack.c.l.b16 %v670
    %v894 = vunpack.c.h.b16 %v670
    %v895 = vunpack.c.l.b16 %v671
    %v896 = vunpack.c.h.b16 %v671
    %v897 = vunpack.c.l.b16 %v672
    %v898 = vunpack.c.h.b16 %v672
    %v899 = vunpack.c.l.b16 %v673
    %v900 = vunpack.c.h.b16 %v673
    %v901 = vunpack.c.l.b16 %v674
    %v902 = vunpack.c.h.b16 %v674
    %v903 = vunpack.c.l.b16 %v675
    %v904 = vunpack.c.h.b16 %v675
    %v905 = vunpack.c.l.b16 %v676
    %v906 = vunpack.c.h.b16 %v676
    %v907 = vunpack.c.l.b16 %v677
    %v908 = vunpack.c.h.b16 %v677
    %v909 = vunpack.c.l.b16 %v678
    %v910 = vunpack.c.h.b16 %v678
    %v911 = vunpack.c.l.b16 %v679
    %v912 = vunpack.c.h.b16 %v679
    %v913 = vunpack.c.l.b16 %v680
    %v914 = vunpack.c.h.b16 %v680
    %v915 = vpack.c.b16 %v795, %v787
    %v916 = vpack.c.b16 %v796, %v788
    %v917 = vpack.c.b16 %v797, %v789
    %v918 = vpack.c.b16 %v798, %v790
    %v919 = vpack.c.b16 %v799, %v791
    %v920 = vpack.c.b16 %v800, %v792
    %v921 = vpack.c.b16 %v801, %v793
    %v922 = vpack.c.b16 %v802, %v794
    %v923 = vpack.c.b16 %v811, %v803
    %v924 = vpack.c.b16 %v812, %v804
    %v925 = vpack.c.b16 %v813, %v805
    %v926 = vpack.c.b16 %v814, %v806
    %v927 = vpack.c.b16 %v815, %v807
    %v928 = vpack.c.b16 %v816, %v808
    %v929 = vpack.c.b16 %v817, %v809
    %v930 = vpack.c.b16 %v818, %v810
    %v931 = vpack.c.b16 %v827, %v819
    %v932 = vpack.c.b16 %v828, %v820
    %v933 = vpack.c.b16 %v829, %v821
    %v934 = vpack.c.b16 %v830, %v822
    %v935 = vpack.c.b16 %v831, %v823
    %v936 = vpack.c.b16 %v832, %v824
    %v937 = vpack.c.b16 %v833, %v825
    %v938 = vpack.c.b16 %v834, %v826
    %v939 = vpack.c.b16 %v843, %v835
    %v940 = vpack.c.b16 %v844, %v836
    %v941 = vpack.c.b16 %v845, %v837
    %v942 = vpack.c.b16 %v846, %v838
    %v943 = vpack.c.b16 %v847, %v839
    %v944 = vpack.c.b16 %v848, %v840
    %v945 = vpack.c.b16 %v849, %v841
    %v946 = vpack.c.b16 %v850, %v842
    %v947 = vpack.c.b16 %v859, %v851
    %v948 = vpack.c.b16 %v860, %v852
    %v949 = vpack.c.b16 %v861, %v853
    %v950 = vpack.c.b16 %v862, %v854
    %v951 = vpack.c.b16 %v863, %v855
    %v952 = vpack.c.b16 %v864, %v856
    %v953 = vpack.c.b16 %v865, %v857
    %v954 = vpack.c.b16 %v866, %v858
    %v955 = vpack.c.b16 %v875, %v867
    %v956 = vpack.c.b16 %v876, %v868
    %v957 = vpack.c.b16 %v877, %v869
    %v958 = vpack.c.b16 %v878, %v870
    %v959 = vpack.c.b16 %v879, %v871
    %v960 = vpack.c.b16 %v880, %v872
    %v961 = vpack.c.b16 %v881, %v873
    %v962 = vpack.c.b16 %v882, %v874
    %v963 = vpack.c.b16 %v891, %v883
    %v964 = vpack.c.b16 %v892, %v884
    %v965 = vpack.c.b16 %v893, %v885
    %v966 = vpack.c.b16 %v894, %v886
    %v967 = vpack.c.b16 %v895, %v887
    %v968 = vpack.c.b16 %v896, %v888
    %v969 = vpack.c.b16 %v897, %v889
    %v970 = vpack.c.b16 %v898, %v890
    %v971 = vpack.c.b16 %v907, %v899
    %v972 = vpack.c.b16 %v908, %v900
    %v973 = vpack.c.b16 %v909, %v901
    %v974 = vpack.c.b16 %v910, %v902
    %v975 = vpack.c.b16 %v911, %v903
    %v976 = vpack.c.b16 %v912, %v904
    %v977 = vpack.c.b16 %v913, %v905
    %v978 = vpack.c.b16 %v914, %v906
    %1043 = vmatprep.subr.bf16.mxu0 %v916
    %1044 = vmatpush1.bf16.msra.mxu0 %v915
    %1045 = vmatprep.subr.bf16.mxu0 %v924
    %1046 = vmatpush1.bf16.msra.mxu0 %v923
    %1047 = vmatprep.subr.bf16.mxu0 %v932
    %1048 = vmatpush1.bf16.msra.mxu0 %v931
    %1049 = vmatprep.subr.bf16.mxu0 %v940
    %1050 = vmatpush1.bf16.msra.mxu0 %v939
    %1051 = vmatprep.subr.bf16.mxu0 %v948
    %1052 = vmatpush1.bf16.msra.mxu0 %v947
    %1053 = vmatprep.subr.bf16.mxu0 %v956
    %1054 = vmatpush1.bf16.msra.mxu0 %v955
    %1055 = vmatprep.subr.bf16.mxu0 %v964
    %1056 = vmatpush1.bf16.msra.mxu0 %v963
    %1057 = vmatprep.subr.bf16.mxu0 %v972
    %1058 = vmatpush1.bf16.msra.mxu0 %v971
    %1059 = vmatprep.subr.bf16.mxu0 0
    %1060 = vmatpush1.bf16.msra.mxu0 0
    %1061 = vmatprep.subr.bf16.mxu0 0
    %1062 = vmatpush1.bf16.msra.mxu0 0
    %1063 = vmatprep.subr.bf16.mxu0 0
    %1064 = vmatpush1.bf16.msra.mxu0 0
    %1065 = vmatprep.subr.bf16.mxu0 0
    %1066 = vmatpush1.bf16.msra.mxu0 0
    %1067 = vmatprep.subr.bf16.mxu0 0
    %1068 = vmatpush1.bf16.msra.mxu0 0
    %1069 = vmatprep.subr.bf16.mxu0 0
    %1070 = vmatpush1.bf16.msra.mxu0 0
    %1071 = vmatprep.subr.bf16.mxu0 0
    %1072 = vmatpush1.bf16.msra.mxu0 0
    %1073 = vmatprep.subr.bf16.mxu0 0
    %1074 = vmatpush1.bf16.msra.mxu0 0
    %1075 = vmatprep.mubr.bf16.mxu0 0
    %1076 = vmatmul.mubr.bf16.gmra.mrb[0].mxu0 %v609
    %v1077 = vpop.f32.mrb[0].mxu0
    %v1078 = vadd.f32 %v686, %v1077
    %v1079 = vpop.f32.mrb[0].mxu0
    %v1080 = vadd.f32 %v690, %v1079
    %v1081 = vpop.f32.mrb[0].mxu0
    %v1082 = vadd.f32 %v686, %v1081
    %v1083 = vpop.f32.mrb[0].mxu0
    %v1084 = vadd.f32 %v690, %v1083
    %1085 = vmatprep.mubr.bf16.mxu0 0
    %1086 = vmatmul.mubr.bf16.gmra.mrb[0].mxu0 %v610
    %v1087 = vpop.f32.mrb[0].mxu0
    %v1088 = vadd.f32 %v686, %v1087
    %v1089 = vpop.f32.mrb[0].mxu0
    %v1090 = vadd.f32 %v690, %v1089
    %v1091 = vpop.f32.mrb[0].mxu0
    %v1092 = vadd.f32 %v686, %v1091
    %v1093 = vpop.f32.mrb[0].mxu0
    %v1094 = vadd.f32 %v690, %v1093
    %1095 = vmatprep.mubr.bf16.mxu0 0
    %1096 = vmatmul.mubr.bf16.gmra.mrb[0].mxu0 %v611
    %v1097 = vpop.f32.mrb[0].mxu0
    %v1098 = vadd.f32 %v686, %v1097
    %v1099 = vpop.f32.mrb[0].mxu0
    %v1100 = vadd.f32 %v690, %v1099
    %v1101 = vpop.f32.mrb[0].mxu0
    %v1102 = vadd.f32 %v686, %v1101
    %v1103 = vpop.f32.mrb[0].mxu0
    %v1104 = vadd.f32 %v690, %v1103
    %1105 = vmatprep.mubr.bf16.mxu0 0
    %1106 = vmatmul.mubr.bf16.gmra.mrb[0].mxu0 %v612
    %v1107 = vpop.f32.mrb[0].mxu0
    %v1108 = vadd.f32 %v686, %v1107
    %v1109 = vpop.f32.mrb[0].mxu0
    %v1110 = vadd.f32 %v690, %v1109
    %v1111 = vpop.f32.mrb[0].mxu0
    %v1112 = vadd.f32 %v686, %v1111
    %v1113 = vpop.f32.mrb[0].mxu0
    %v1114 = vadd.f32 %v690, %v1113
    %1115 = vmatprep.mubr.bf16.mxu0 0
    %1116 = vmatmul.mubr.bf16.gmra.mrb[0].mxu0 %v613
    %v1117 = vpop.f32.mrb[0].mxu0
    %v1118 = vadd.f32 %v686, %v1117
    %v1119 = vpop.f32.mrb[0].mxu0
    %v1120 = vadd.f32 %v690, %v1119
    %v1121 = vpop.f32.mrb[0].mxu0
    %v1122 = vadd.f32 %v686, %v1121
    %v1123 = vpop.f32.mrb[0].mxu0
    %v1124 = vadd.f32 %v690, %v1123
    %1125 = vmatprep.mubr.bf16.mxu0 0
    %1126 = vmatmul.mubr.bf16.gmra.mrb[0].mxu0 %v614
    %v1127 = vpop.f32.mrb[0].mxu0
    %v1128 = vadd.f32 %v686, %v1127
    %v1129 = vpop.f32.mrb[0].mxu0
    %v1130 = vadd.f32 %v690, %v1129
    %v1131 = vpop.f32.mrb[0].mxu0
    %v1132 = vadd.f32 %v686, %v1131
    %v1133 = vpop.f32.mrb[0].mxu0
    %v1134 = vadd.f32 %v690, %v1133
    %1135 = vmatprep.mubr.bf16.mxu0 0
    %1136 = vmatmul.mubr.bf16.gmra.mrb[0].mxu0 %v615
    %v1137 = vpop.f32.mrb[0].mxu0
    %v1138 = vadd.f32 %v686, %v1137
    %v1139 = vpop.f32.mrb[0].mxu0
    %v1140 = vadd.f32 %v690, %v1139
    %v1141 = vpop.f32.mrb[0].mxu0
    %v1142 = vadd.f32 %v686, %v1141
    %v1143 = vpop.f32.mrb[0].mxu0
    %v1144 = vadd.f32 %v690, %v1143
    %1145 = vmatprep.mubr.bf16.mxu0 0
    %1146 = vmatmul.mubr.bf16.gmra.mrb[0].mxu0 %v616
    %v1147 = vpop.f32.mrb[0].mxu0
    %v1148 = vadd.f32 %v686, %v1147
    %v1149 = vpop.f32.mrb[0].mxu0
    %v1150 = vadd.f32 %v690, %v1149
    %v1151 = vpop.f32.mrb[0].mxu0
    %v1152 = vadd.f32 %v686, %v1151
    %v1153 = vpop.f32.mrb[0].mxu0
    %v1154 = vadd.f32 %v690, %v1153
    %1155 = vdwg.mxu0
    %1156 = vmatprep.subr.bf16.mxu0 %v918
    %1157 = vmatpush1.bf16.msra.mxu0 %v917
    %1158 = vmatprep.subr.bf16.mxu0 %v926
    %1159 = vmatpush1.bf16.msra.mxu0 %v925
    %1160 = vmatprep.subr.bf16.mxu0 %v934
    %1161 = vmatpush1.bf16.msra.mxu0 %v933
    %1162 = vmatprep.subr.bf16.mxu0 %v942
    %1163 = vmatpush1.bf16.msra.mxu0 %v941
    %1164 = vmatprep.subr.bf16.mxu0 %v950
    %1165 = vmatpush1.bf16.msra.mxu0 %v949
    %1166 = vmatprep.subr.bf16.mxu0 %v958
    %1167 = vmatpush1.bf16.msra.mxu0 %v957
    %1168 = vmatprep.subr.bf16.mxu0 %v966
    %1169 = vmatpush1.bf16.msra.mxu0 %v965
    %1170 = vmatprep.subr.bf16.mxu0 %v974
    %1171 = vmatpush1.bf16.msra.mxu0 %v973
    %1172 = vmatprep.subr.bf16.mxu0 0
    %1173 = vmatpush1.bf16.msra.mxu0 0
    %1174 = vmatprep.subr.bf16.mxu0 0
    %1175 = vmatpush1.bf16.msra.mxu0 0
    %1176 = vmatprep.subr.bf16.mxu0 0
    %1177 = vmatpush1.bf16.msra.mxu0 0
    %1178 = vmatprep.subr.bf16.mxu0 0
    %1179 = vmatpush1.bf16.msra.mxu0 0
    %1180 = vmatprep.subr.bf16.mxu0 0
    %1181 = vmatpush1.bf16.msra.mxu0 0
    %1182 = vmatprep.subr.bf16.mxu0 0
    %1183 = vmatpush1.bf16.msra.mxu0 0
    %1184 = vmatprep.subr.bf16.mxu0 0
    %1185 = vmatpush1.bf16.msra.mxu0 0
    %1186 = vmatprep.subr.bf16.mxu0 0
    %1187 = vmatpush1.bf16.msra.mxu0 0
    %1188 = vmatprep.mubr.bf16.mxu0 0
    %1189 = vmatmul.mubr.bf16.gmra.mrb[0].mxu0 %v609
    %v1190 = vpop.f32.mrb[0].mxu0
    %v1191 = vadd.f32 %v694, %v1190
    %v1192 = vpop.f32.mrb[0].mxu0
    %v1193 = vadd.f32 %v698, %v1192
    %v1194 = vpop.f32.mrb[0].mxu0
    %v1195 = vadd.f32 %v694, %v1194
    %v1196 = vpop.f32.mrb[0].mxu0
    %v1197 = vadd.f32 %v698, %v1196
    %1198 = vmatprep.mubr.bf16.mxu0 0
    %1199 = vmatmul.mubr.bf16.gmra.mrb[0].mxu0 %v610
    %v1200 = vpop.f32.mrb[0].mxu0
    %v1201 = vadd.f32 %v694, %v1200
    %v1202 = vpop.f32.mrb[0].mxu0
    %v1203 = vadd.f32 %v698, %v1202
    %v1204 = vpop.f32.mrb[0].mxu0
    %v1205 = vadd.f32 %v694, %v1204
    %v1206 = vpop.f32.mrb[0].mxu0
    %v1207 = vadd.f32 %v698, %v1206
    %1208 = vmatprep.mubr.bf16.mxu0 0
    %1209 = vmatmul.mubr.bf16.gmra.mrb[0].mxu0 %v611
    %v1210 = vpop.f32.mrb[0].mxu0
    %v1211 = vadd.f32 %v694, %v1210
    %v1212 = vpop.f32.mrb[0].mxu0
    %v1213 = vadd.f32 %v698, %v1212
    %v1214 = vpop.f32.mrb[0].mxu0
    %v1215 = vadd.f32 %v694, %v1214
    %v1216 = vpop.f32.mrb[0].mxu0
    %v1217 = vadd.f32 %v698, %v1216
    %1218 = vmatprep.mubr.bf16.mxu0 0
    %1219 = vmatmul.mubr.bf16.gmra.mrb[0].mxu0 %v612
    %v1220 = vpop.f32.mrb[0].mxu0
    %v1221 = vadd.f32 %v694, %v1220
    %v1222 = vpop.f32.mrb[0].mxu0
    %v1223 = vadd.f32 %v698, %v1222
    %v1224 = vpop.f32.mrb[0].mxu0
    %v1225 = vadd.f32 %v694, %v1224
    %v1226 = vpop.f32.mrb[0].mxu0
    %v1227 = vadd.f32 %v698, %v1226
    %1228 = vmatprep.mubr.bf16.mxu0 0
    %1229 = vmatmul.mubr.bf16.gmra.mrb[0].mxu0 %v613
    %v1230 = vpop.f32.mrb[0].mxu0
    %v1231 = vadd.f32 %v694, %v1230
    %v1232 = vpop.f32.mrb[0].mxu0
    %v1233 = vadd.f32 %v698, %v1232
    %v1234 = vpop.f32.mrb[0].mxu0
    %v1235 = vadd.f32 %v694, %v1234
    %v1236 = vpop.f32.mrb[0].mxu0
    %v1237 = vadd.f32 %v698, %v1236
    %1238 = vmatprep.mubr.bf16.mxu0 0
    %1239 = vmatmul.mubr.bf16.gmra.mrb[0].mxu0 %v614
    %v1240 = vpop.f32.mrb[0].mxu0
    %v1241 = vadd.f32 %v694, %v1240
    %v1242 = vpop.f32.mrb[0].mxu0
    %v1243 = vadd.f32 %v698, %v1242
    %v1244 = vpop.f32.mrb[0].mxu0
    %v1245 = vadd.f32 %v694, %v1244
    %v1246 = vpop.f32.mrb[0].mxu0
    %v1247 = vadd.f32 %v698, %v1246
    %1248 = vmatprep.mubr.bf16.mxu0 0
    %1249 = vmatmul.mubr.bf16.gmra.mrb[0].mxu0 %v615
    %v1250 = vpop.f32.mrb[0].mxu0
    %v1251 = vadd.f32 %v694, %v1250
    %v1252 = vpop.f32.mrb[0].mxu0
    %v1253 = vadd.f32 %v698, %v1252
    %v1254 = vpop.f32.mrb[0].mxu0
    %v1255 = vadd.f32 %v694, %v1254
    %v1256 = vpop.f32.mrb[0].mxu0
    %v1257 = vadd.f32 %v698, %v1256
    %1258 = vmatprep.mubr.bf16.mxu0 0
    %1259 = vmatmul.mubr.bf16.gmra.mrb[0].mxu0 %v616
    %v1260 = vpop.f32.mrb[0].mxu0
    %v1261 = vadd.f32 %v694, %v1260
    %v1262 = vpop.f32.mrb[0].mxu0
    %v1263 = vadd.f32 %v698, %v1262
    %v1264 = vpop.f32.mrb[0].mxu0
    %v1265 = vadd.f32 %v694, %v1264
    %v1266 = vpop.f32.mrb[0].mxu0
    %v1267 = vadd.f32 %v698, %v1266
    %1268 = vdwg.mxu0
    %1269 = vmatprep.subr.bf16.mxu0 %v920
    %1270 = vmatpush1.bf16.msra.mxu0 %v919
    %1271 = vmatprep.subr.bf16.mxu0 %v928
    %1272 = vmatpush1.bf16.msra.mxu0 %v927
    %1273 = vmatprep.subr.bf16.mxu0 %v936
    %1274 = vmatpush1.bf16.msra.mxu0 %v935
    %1275 = vmatprep.subr.bf16.mxu0 %v944
    %1276 = vmatpush1.bf16.msra.mxu0 %v943
    %1277 = vmatprep.subr.bf16.mxu0 %v952
    %1278 = vmatpush1.bf16.msra.mxu0 %v951
    %1279 = vmatprep.subr.bf16.mxu0 %v960
    %1280 = vmatpush1.bf16.msra.mxu0 %v959
    %1281 = vmatprep.subr.bf16.mxu0 %v968
    %1282 = vmatpush1.bf16.msra.mxu0 %v967
    %1283 = vmatprep.subr.bf16.mxu0 %v976
    %1284 = vmatpush1.bf16.msra.mxu0 %v975
    %1285 = vmatprep.subr.bf16.mxu0 0
    %1286 = vmatpush1.bf16.msra.mxu0 0
    %1287 = vmatprep.subr.bf16.mxu0 0
    %1288 = vmatpush1.bf16.msra.mxu0 0
    %1289 = vmatprep.subr.bf16.mxu0 0
    %1290 = vmatpush1.bf16.msra.mxu0 0
    %1291 = vmatprep.subr.bf16.mxu0 0
    %1292 = vmatpush1.bf16.msra.mxu0 0
    %1293 = vmatprep.subr.bf16.mxu0 0
    %1294 = vmatpush1.bf16.msra.mxu0 0
    %1295 = vmatprep.subr.bf16.mxu0 0
    %1296 = vmatpush1.bf16.msra.mxu0 0
    %1297 = vmatprep.subr.bf16.mxu0 0
    %1298 = vmatpush1.bf16.msra.mxu0 0
    %1299 = vmatprep.subr.bf16.mxu0 0
    %1300 = vmatpush1.bf16.msra.mxu0 0
    %1301 = vmatprep.mubr.bf16.mxu0 0
    %1302 = vmatmul.mubr.bf16.gmra.mrb[0].mxu0 %v609
    %v1303 = vpop.f32.mrb[0].mxu0
    %v1304 = vadd.f32 %v702, %v1303
    %v1305 = vpop.f32.mrb[0].mxu0
    %v1306 = vadd.f32 %v706, %v1305
    %v1307 = vpop.f32.mrb[0].mxu0
    %v1308 = vadd.f32 %v702, %v1307
    %v1309 = vpop.f32.mrb[0].mxu0
    %v1310 = vadd.f32 %v706, %v1309
    %1311 = vmatprep.mubr.bf16.mxu0 0
    %1312 = vmatmul.mubr.bf16.gmra.mrb[0].mxu0 %v610
    %v1313 = vpop.f32.mrb[0].mxu0
    %v1314 = vadd.f32 %v702, %v1313
    %v1315 = vpop.f32.mrb[0].mxu0
    %v1316 = vadd.f32 %v706, %v1315
    %v1317 = vpop.f32.mrb[0].mxu0
    %v1318 = vadd.f32 %v702, %v1317
    %v1319 = vpop.f32.mrb[0].mxu0
    %v1320 = vadd.f32 %v706, %v1319
    %1321 = vmatprep.mubr.bf16.mxu0 0
    %1322 = vmatmul.mubr.bf16.gmra.mrb[0].mxu0 %v611
    %v1323 = vpop.f32.mrb[0].mxu0
    %v1324 = vadd.f32 %v702, %v1323
    %v1325 = vpop.f32.mrb[0].mxu0
    %v1326 = vadd.f32 %v706, %v1325
    %v1327 = vpop.f32.mrb[0].mxu0
    %v1328 = vadd.f32 %v702, %v1327
    %v1329 = vpop.f32.mrb[0].mxu0
    %v1330 = vadd.f32 %v706, %v1329
    %1331 = vmatprep.mubr.bf16.mxu0 0
    %1332 = vmatmul.mubr.bf16.gmra.mrb[0].mxu0 %v612
    %v1333 = vpop.f32.mrb[0].mxu0
    %v1334 = vadd.f32 %v702, %v1333
    %v1335 = vpop.f32.mrb[0].mxu0
    %v1336 = vadd.f32 %v706, %v1335
    %v1337 = vpop.f32.mrb[0].mxu0
    %v1338 = vadd.f32 %v702, %v1337
    %v1339 = vpop.f32.mrb[0].mxu0
    %v1340 = vadd.f32 %v706, %v1339
    %1341 = vmatprep.mubr.bf16.mxu0 0
    %1342 = vmatmul.mubr.bf16.gmra.mrb[0].mxu0 %v613
    %v1343 = vpop.f32.mrb[0].mxu0
    %v1344 = vadd.f32 %v702, %v1343
    %v1345 = vpop.f32.mrb[0].mxu0
    %v1346 = vadd.f32 %v706, %v1345
    %v1347 = vpop.f32.mrb[0].mxu0
    %v1348 = vadd.f32 %v702, %v1347
    %v1349 = vpop.f32.mrb[0].mxu0
    %v1350 = vadd.f32 %v706, %v1349
    %1351 = vmatprep.mubr.bf16.mxu0 0
    %1352 = vmatmul.mubr.bf16.gmra.mrb[0].mxu0 %v614
    %v1353 = vpop.f32.mrb[0].mxu0
    %v1354 = vadd.f32 %v702, %v1353
    %v1355 = vpop.f32.mrb[0].mxu0
    %v1356 = vadd.f32 %v706, %v1355
    %v1357 = vpop.f32.mrb[0].mxu0
    %v1358 = vadd.f32 %v702, %v1357
    %v1359 = vpop.f32.mrb[0].mxu0
    %v1360 = vadd.f32 %v706, %v1359
    %1361 = vmatprep.mubr.bf16.mxu0 0
    %1362 = vmatmul.mubr.bf16.gmra.mrb[0].mxu0 %v615
    %v1363 = vpop.f32.mrb[0].mxu0
    %v1364 = vadd.f32 %v702, %v1363
    %v1365 = vpop.f32.mrb[0].mxu0
    %v1366 = vadd.f32 %v706, %v1365
    %v1367 = vpop.f32.mrb[0].mxu0
    %v1368 = vadd.f32 %v702, %v1367
    %v1369 = vpop.f32.mrb[0].mxu0
    %v1370 = vadd.f32 %v706, %v1369
    %1371 = vmatprep.mubr.bf16.mxu0 0
    %1372 = vmatmul.mubr.bf16.gmra.mrb[0].mxu0 %v616
    %v1373 = vpop.f32.mrb[0].mxu0
    %v1374 = vadd.f32 %v702, %v1373
    %v1375 = vpop.f32.mrb[0].mxu0
    %v1376 = vadd.f32 %v706, %v1375
    %v1377 = vpop.f32.mrb[0].mxu0
    %v1378 = vadd.f32 %v702, %v1377
    %v1379 = vpop.f32.mrb[0].mxu0
    %v1380 = vadd.f32 %v706, %v1379
    %1381 = vdwg.mxu0
    %1382 = vmatprep.subr.bf16.mxu0 %v922
    %1383 = vmatpush1.bf16.msra.mxu0 %v921
    %1384 = vmatprep.subr.bf16.mxu0 %v930
    %1385 = vmatpush1.bf16.msra.mxu0 %v929
    %1386 = vmatprep.subr.bf16.mxu0 %v938
    %1387 = vmatpush1.bf16.msra.mxu0 %v937
    %1388 = vmatprep.subr.bf16.mxu0 %v946
    %1389 = vmatpush1.bf16.msra.mxu0 %v945
    %1390 = vmatprep.subr.bf16.mxu0 %v954
    %1391 = vmatpush1.bf16.msra.mxu0 %v953
    %1392 = vmatprep.subr.bf16.mxu0 %v962
    %1393 = vmatpush1.bf16.msra.mxu0 %v961
    %1394 = vmatprep.subr.bf16.mxu0 %v970
    %1395 = vmatpush1.bf16.msra.mxu0 %v969
    %1396 = vmatprep.subr.bf16.mxu0 %v978
    %1397 = vmatpush1.bf16.msra.mxu0 %v977
    %1398 = vmatprep.subr.bf16.mxu0 0
    %1399 = vmatpush1.bf16.msra.mxu0 0
    %1400 = vmatprep.subr.bf16.mxu0 0
    %1401 = vmatpush1.bf16.msra.mxu0 0
    %1402 = vmatprep.subr.bf16.mxu0 0
    %1403 = vmatpush1.bf16.msra.mxu0 0
    %1404 = vmatprep.subr.bf16.mxu0 0
    %1405 = vmatpush1.bf16.msra.mxu0 0
    %1406 = vmatprep.subr.bf16.mxu0 0
    %1407 = vmatpush1.bf16.msra.mxu0 0
    %1408 = vmatprep.subr.bf16.mxu0 0
    %1409 = vmatpush1.bf16.msra.mxu0 0
    %1410 = vmatprep.subr.bf16.mxu0 0
    %1411 = vmatpush1.bf16.msra.mxu0 0
    %1412 = vmatprep.subr.bf16.mxu0 0
    %1413 = vmatpush1.bf16.msra.mxu0 0
    %1414 = vmatprep.mubr.bf16.mxu0 0
    %1415 = vmatmul.mubr.bf16.gmra.mrb[0].mxu0 %v609
    %v1416 = vpop.f32.mrb[0].mxu0
    %v1417 = vadd.f32 %v710, %v1416
    %v1418 = vpop.f32.mrb[0].mxu0
    %v1419 = vadd.f32 %v714, %v1418
    %v1420 = vpop.f32.mrb[0].mxu0
    %v1421 = vadd.f32 %v710, %v1420
    %v1422 = vpop.f32.mrb[0].mxu0
    %v1423 = vadd.f32 %v714, %v1422
    %1424 = vmatprep.mubr.bf16.mxu0 0
    %1425 = vmatmul.mubr.bf16.gmra.mrb[0].mxu0 %v610
    %v1426 = vpop.f32.mrb[0].mxu0
    %v1427 = vadd.f32 %v710, %v1426
    %v1428 = vpop.f32.mrb[0].mxu0
    %v1429 = vadd.f32 %v714, %v1428
    %v1430 = vpop.f32.mrb[0].mxu0
    %v1431 = vadd.f32 %v710, %v1430
    %v1432 = vpop.f32.mrb[0].mxu0
    %v1433 = vadd.f32 %v714, %v1432
    %1434 = vmatprep.mubr.bf16.mxu0 0
    %1435 = vmatmul.mubr.bf16.gmra.mrb[0].mxu0 %v611
    %v1436 = vpop.f32.mrb[0].mxu0
    %v1437 = vadd.f32 %v710, %v1436
    %v1438 = vpop.f32.mrb[0].mxu0
    %v1439 = vadd.f32 %v714, %v1438
    %v1440 = vpop.f32.mrb[0].mxu0
    %v1441 = vadd.f32 %v710, %v1440
    %v1442 = vpop.f32.mrb[0].mxu0
    %v1443 = vadd.f32 %v714, %v1442
    %1444 = vmatprep.mubr.bf16.mxu0 0
    %1445 = vmatmul.mubr.bf16.gmra.mrb[0].mxu0 %v612
    %v1446 = vpop.f32.mrb[0].mxu0
    %v1447 = vadd.f32 %v710, %v1446
    %v1448 = vpop.f32.mrb[0].mxu0
    %v1449 = vadd.f32 %v714, %v1448
    %v1450 = vpop.f32.mrb[0].mxu0
    %v1451 = vadd.f32 %v710, %v1450
    %v1452 = vpop.f32.mrb[0].mxu0
    %v1453 = vadd.f32 %v714, %v1452
    %1454 = vmatprep.mubr.bf16.mxu0 0
    %1455 = vmatmul.mubr.bf16.gmra.mrb[0].mxu0 %v613
    %v1456 = vpop.f32.mrb[0].mxu0
    %v1457 = vadd.f32 %v710, %v1456
    %v1458 = vpop.f32.mrb[0].mxu0
    %v1459 = vadd.f32 %v714, %v1458
    %v1460 = vpop.f32.mrb[0].mxu0
    %v1461 = vadd.f32 %v710, %v1460
    %v1462 = vpop.f32.mrb[0].mxu0
    %v1463 = vadd.f32 %v714, %v1462
    %1464 = vmatprep.mubr.bf16.mxu0 0
    %1465 = vmatmul.mubr.bf16.gmra.mrb[0].mxu0 %v614
    %v1466 = vpop.f32.mrb[0].mxu0
    %v1467 = vadd.f32 %v710, %v1466
    %v1468 = vpop.f32.mrb[0].mxu0
    %v1469 = vadd.f32 %v714, %v1468
    %v1470 = vpop.f32.mrb[0].mxu0
    %v1471 = vadd.f32 %v710, %v1470
    %v1472 = vpop.f32.mrb[0].mxu0
    %v1473 = vadd.f32 %v714, %v1472
    %1474 = vmatprep.mubr.bf16.mxu0 0
    %1475 = vmatmul.mubr.bf16.gmra.mrb[0].mxu0 %v615
    %v1476 = vpop.f32.mrb[0].mxu0
    %v1477 = vadd.f32 %v710, %v1476
    %v1478 = vpop.f32.mrb[0].mxu0
    %v1479 = vadd.f32 %v714, %v1478
    %v1480 = vpop.f32.mrb[0].mxu0
    %v1481 = vadd.f32 %v710, %v1480
    %v1482 = vpop.f32.mrb[0].mxu0
    %v1483 = vadd.f32 %v714, %v1482
    %1484 = vmatprep.mubr.bf16.mxu0 0
    %1485 = vmatmul.mubr.bf16.gmra.mrb[0].mxu0 %v616
    %v1486 = vpop.f32.mrb[0].mxu0
    %v1487 = vadd.f32 %v710, %v1486
    %v1488 = vpop.f32.mrb[0].mxu0
    %v1489 = vadd.f32 %v714, %v1488
    %v1490 = vpop.f32.mrb[0].mxu0
    %v1491 = vadd.f32 %v710, %v1490
    %v1492 = vpop.f32.mrb[0].mxu0
    %v1493 = vadd.f32 %v714, %v1492
    %1494 = vdwg.mxu0
    %v1495 = vmax.f32 %v1078, 0.0
    %v1496 = vmax.f32 %v1080, 0.0
    %v1497 = vmax.f32 %v1191, 0.0
    %v1498 = vmax.f32 %v1193, 0.0
    %v1499 = vmax.f32 %v1304, 0.0
    %v1500 = vmax.f32 %v1306, 0.0
    %v1501 = vmax.f32 %v1417, 0.0
    %v1502 = vmax.f32 %v1419, 0.0
    %v1503 = vmax.f32 %v1082, 0.0
    %v1504 = vmax.f32 %v1084, 0.0
    %v1505 = vmax.f32 %v1195, 0.0
    %v1506 = vmax.f32 %v1197, 0.0
    %v1507 = vmax.f32 %v1308, 0.0
    %v1508 = vmax.f32 %v1310, 0.0
    %v1509 = vmax.f32 %v1421, 0.0
    %v1510 = vmax.f32 %v1423, 0.0
    %v1511 = vmax.f32 %v1088, 0.0
    %v1512 = vmax.f32 %v1090, 0.0
    %v1513 = vmax.f32 %v1201, 0.0
    %v1514 = vmax.f32 %v1203, 0.0
    %v1515 = vmax.f32 %v1314, 0.0
    %v1516 = vmax.f32 %v1316, 0.0
    %v1517 = vmax.f32 %v1427, 0.0
    %v1518 = vmax.f32 %v1429, 0.0
    %v1519 = vmax.f32 %v1092, 0.0
    %v1520 = vmax.f32 %v1094, 0.0
    %v1521 = vmax.f32 %v1205, 0.0
    %v1522 = vmax.f32 %v1207, 0.0
    %v1523 = vmax.f32 %v1318, 0.0
    %v1524 = vmax.f32 %v1320, 0.0
    %v1525 = vmax.f32 %v1431, 0.0
    %v1526 = vmax.f32 %v1433, 0.0
    %v1527 = vmax.f32 %v1098, 0.0
    %v1528 = vmax.f32 %v1100, 0.0
    %v1529 = vmax.f32 %v1211, 0.0
    %v1530 = vmax.f32 %v1213, 0.0
    %v1531 = vmax.f32 %v1324, 0.0
    %v1532 = vmax.f32 %v1326, 0.0
    %v1533 = vmax.f32 %v1437, 0.0
    %v1534 = vmax.f32 %v1439, 0.0
    %v1535 = vmax.f32 %v1102, 0.0
    %v1536 = vmax.f32 %v1104, 0.0
    %v1537 = vmax.f32 %v1215, 0.0
    %v1538 = vmax.f32 %v1217, 0.0
    %v1539 = vmax.f32 %v1328, 0.0
    %v1540 = vmax.f32 %v1330, 0.0
    %v1541 = vmax.f32 %v1441, 0.0
    %v1542 = vmax.f32 %v1443, 0.0
    %v1543 = vmax.f32 %v1108, 0.0
    %v1544 = vmax.f32 %v1110, 0.0
    %v1545 = vmax.f32 %v1221, 0.0
    %v1546 = vmax.f32 %v1223, 0.0
    %v1547 = vmax.f32 %v1334, 0.0
    %v1548 = vmax.f32 %v1336, 0.0
    %v1549 = vmax.f32 %v1447, 0.0
    %v1550 = vmax.f32 %v1449, 0.0
    %v1551 = vmax.f32 %v1112, 0.0
    %v1552 = vmax.f32 %v1114, 0.0
    %v1553 = vmax.f32 %v1225, 0.0
    %v1554 = vmax.f32 %v1227, 0.0
    %v1555 = vmax.f32 %v1338, 0.0
    %v1556 = vmax.f32 %v1340, 0.0
    %v1557 = vmax.f32 %v1451, 0.0
    %v1558 = vmax.f32 %v1453, 0.0
    %v1559 = vmax.f32 %v1118, 0.0
    %v1560 = vmax.f32 %v1120, 0.0
    %v1561 = vmax.f32 %v1231, 0.0
    %v1562 = vmax.f32 %v1233, 0.0
    %v1563 = vmax.f32 %v1344, 0.0
    %v1564 = vmax.f32 %v1346, 0.0
    %v1565 = vmax.f32 %v1457, 0.0
    %v1566 = vmax.f32 %v1459, 0.0
    %v1567 = vmax.f32 %v1122, 0.0
    %v1568 = vmax.f32 %v1124, 0.0
    %v1569 = vmax.f32 %v1235, 0.0
    %v1570 = vmax.f32 %v1237, 0.0
    %v1571 = vmax.f32 %v1348, 0.0
    %v1572 = vmax.f32 %v1350, 0.0
    %v1573 = vmax.f32 %v1461, 0.0
    %v1574 = vmax.f32 %v1463, 0.0
    %v1575 = vmax.f32 %v1128, 0.0
    %v1576 = vmax.f32 %v1130, 0.0
    %v1577 = vmax.f32 %v1241, 0.0
    %v1578 = vmax.f32 %v1243, 0.0
    %v1579 = vmax.f32 %v1354, 0.0
    %v1580 = vmax.f32 %v1356, 0.0
    %v1581 = vmax.f32 %v1467, 0.0
    %v1582 = vmax.f32 %v1469, 0.0
    %v1583 = vmax.f32 %v1132, 0.0
    %v1584 = vmax.f32 %v1134, 0.0
    %v1585 = vmax.f32 %v1245, 0.0
    %v1586 = vmax.f32 %v1247, 0.0
    %v1587 = vmax.f32 %v1358, 0.0
    %v1588 = vmax.f32 %v1360, 0.0
    %v1589 = vmax.f32 %v1471, 0.0
    %v1590 = vmax.f32 %v1473, 0.0
    %v1591 = vmax.f32 %v1138, 0.0
    %v1592 = vmax.f32 %v1140, 0.0
    %v1593 = vmax.f32 %v1251, 0.0
    %v1594 = vmax.f32 %v1253, 0.0
    %v1595 = vmax.f32 %v1364, 0.0
    %v1596 = vmax.f32 %v1366, 0.0
    %v1597 = vmax.f32 %v1477, 0.0
    %v1598 = vmax.f32 %v1479, 0.0
    %v1599 = vmax.f32 %v1142, 0.0
    %v1600 = vmax.f32 %v1144, 0.0
    %v1601 = vmax.f32 %v1255, 0.0
    %v1602 = vmax.f32 %v1257, 0.0
    %v1603 = vmax.f32 %v1368, 0.0
    %v1604 = vmax.f32 %v1370, 0.0
    %v1605 = vmax.f32 %v1481, 0.0
    %v1606 = vmax.f32 %v1483, 0.0
    %v1607 = vmax.f32 %v1148, 0.0
    %v1608 = vmax.f32 %v1150, 0.0
    %v1609 = vmax.f32 %v1261, 0.0
    %v1610 = vmax.f32 %v1263, 0.0
    %v1611 = vmax.f32 %v1374, 0.0
    %v1612 = vmax.f32 %v1376, 0.0
    %v1613 = vmax.f32 %v1487, 0.0
    %v1614 = vmax.f32 %v1489, 0.0
    %v1615 = vmax.f32 %v1152, 0.0
    %v1616 = vmax.f32 %v1154, 0.0
    %v1617 = vmax.f32 %v1265, 0.0
    %v1618 = vmax.f32 %v1267, 0.0
    %v1619 = vmax.f32 %v1378, 0.0
    %v1620 = vmax.f32 %v1380, 0.0
    %v1621 = vmax.f32 %v1491, 0.0
    %v1622 = vmax.f32 %v1493, 0.0
    %v1623 = vmax.f32 %v1495, %v1503
    %v1624 = vmax.f32 %v1623, %v1511
    %v1625 = vmax.f32 %v1624, %v1519
    %v1626 = vmax.f32 %v1625, %v1527
    %v1627 = vmax.f32 %v1626, %v1535
    %v1628 = vmax.f32 %v1627, %v1543
    %v1629 = vmax.f32 %v1628, %v1551
    %v1630 = vrot.slane %v1629, 4
    %v1631 = vmax.f32 %v1629, %v1630
    %v1632 = vrot.slane %v1631, 2
    %v1633 = vmax.f32 %v1631, %v1632
    %v1634 = vrot.slane %v1633, 1
    %v1635 = vmax.f32 %v1633, %v1634
    %v1636 = vmax.f32 %v1496, %v1504
    %v1637 = vmax.f32 %v1636, %v1512
    %v1638 = vmax.f32 %v1637, %v1520
    %v1639 = vmax.f32 %v1638, %v1528
    %v1640 = vmax.f32 %v1639, %v1536
    %v1641 = vmax.f32 %v1640, %v1544
    %v1642 = vmax.f32 %v1641, %v1552
    %v1643 = vrot.slane %v1642, 4
    %v1644 = vmax.f32 %v1642, %v1643
    %v1645 = vrot.slane %v1644, 2
    %v1646 = vmax.f32 %v1644, %v1645
    %v1647 = vrot.slane %v1646, 1
    %v1648 = vmax.f32 %v1646, %v1647
    %v1649 = vmax.f32 %v1497, %v1505
    %v1650 = vmax.f32 %v1649, %v1513
    %v1651 = vmax.f32 %v1650, %v1521
    %v1652 = vmax.f32 %v1651, %v1529
    %v1653 = vmax.f32 %v1652, %v1537
    %v1654 = vmax.f32 %v1653, %v1545
    %v1655 = vmax.f32 %v1654, %v1553
    %v1656 = vrot.slane %v1655, 4
    %v1657 = vmax.f32 %v1655, %v1656
    %v1658 = vrot.slane %v1657, 2
    %v1659 = vmax.f32 %v1657, %v1658
    %v1660 = vrot.slane %v1659, 1
    %v1661 = vmax.f32 %v1659, %v1660
    %v1662 = vmax.f32 %v1498, %v1506
    %v1663 = vmax.f32 %v1662, %v1514
    %v1664 = vmax.f32 %v1663, %v1522
    %v1665 = vmax.f32 %v1664, %v1530
    %v1666 = vmax.f32 %v1665, %v1538
    %v1667 = vmax.f32 %v1666, %v1546
    %v1668 = vmax.f32 %v1667, %v1554
    %v1669 = vrot.slane %v1668, 4
    %v1670 = vmax.f32 %v1668, %v1669
    %v1671 = vrot.slane %v1670, 2
    %v1672 = vmax.f32 %v1670, %v1671
    %v1673 = vrot.slane %v1672, 1
    %v1674 = vmax.f32 %v1672, %v1673
    %v1675 = vmax.f32 %v1499, %v1507
    %v1676 = vmax.f32 %v1675, %v1515
    %v1677 = vmax.f32 %v1676, %v1523
    %v1678 = vmax.f32 %v1677, %v1531
    %v1679 = vmax.f32 %v1678, %v1539
    %v1680 = vmax.f32 %v1679, %v1547
    %v1681 = vmax.f32 %v1680, %v1555
    %v1682 = vrot.slane %v1681, 4
    %v1683 = vmax.f32 %v1681, %v1682
    %v1684 = vrot.slane %v1683, 2
    %v1685 = vmax.f32 %v1683, %v1684
    %v1686 = vrot.slane %v1685, 1
    %v1687 = vmax.f32 %v1685, %v1686
    %v1688 = vmax.f32 %v1500, %v1508
    %v1689 = vmax.f32 %v1688, %v1516
    %v1690 = vmax.f32 %v1689, %v1524
    %v1691 = vmax.f32 %v1690, %v1532
    %v1692 = vmax.f32 %v1691, %v1540
    %v1693 = vmax.f32 %v1692, %v1548
    %v1694 = vmax.f32 %v1693, %v1556
    %v1695 = vrot.slane %v1694, 4
    %v1696 = vmax.f32 %v1694, %v1695
    %v1697 = vrot.slane %v1696, 2
    %v1698 = vmax.f32 %v1696, %v1697
    %v1699 = vrot.slane %v1698, 1
    %v1700 = vmax.f32 %v1698, %v1699
    %v1701 = vmax.f32 %v1501, %v1509
    %v1702 = vmax.f32 %v1701, %v1517
    %v1703 = vmax.f32 %v1702, %v1525
    %v1704 = vmax.f32 %v1703, %v1533
    %v1705 = vmax.f32 %v1704, %v1541
    %v1706 = vmax.f32 %v1705, %v1549
    %v1707 = vmax.f32 %v1706, %v1557
    %v1708 = vrot.slane %v1707, 4
    %v1709 = vmax.f32 %v1707, %v1708
    %v1710 = vrot.slane %v1709, 2
    %v1711 = vmax.f32 %v1709, %v1710
    %v1712 = vrot.slane %v1711, 1
    %v1713 = vmax.f32 %v1711, %v1712
    %v1714 = vmax.f32 %v1502, %v1510
    %v1715 = vmax.f32 %v1714, %v1518
    %v1716 = vmax.f32 %v1715, %v1526
    %v1717 = vmax.f32 %v1716, %v1534
    %v1718 = vmax.f32 %v1717, %v1542
    %v1719 = vmax.f32 %v1718, %v1550
    %v1720 = vmax.f32 %v1719, %v1558
    %v1721 = vrot.slane %v1720, 4
    %v1722 = vmax.f32 %v1720, %v1721
    %v1723 = vrot.slane %v1722, 2
    %v1724 = vmax.f32 %v1722, %v1723
    %v1725 = vrot.slane %v1724, 1
    %v1726 = vmax.f32 %v1724, %v1725
    %v1727 = vmax.f32 %v1559, %v1567
    %v1728 = vmax.f32 %v1727, %v1575
    %v1729 = vmax.f32 %v1728, %v1583
    %v1730 = vmax.f32 %v1729, %v1591
    %v1731 = vmax.f32 %v1730, %v1599
    %v1732 = vmax.f32 %v1731, %v1607
    %v1733 = vmax.f32 %v1732, %v1615
    %v1734 = vrot.slane %v1733, 4
    %v1735 = vmax.f32 %v1733, %v1734
    %v1736 = vrot.slane %v1735, 2
    %v1737 = vmax.f32 %v1735, %v1736
    %v1738 = vrot.slane %v1737, 1
    %v1739 = vmax.f32 %v1737, %v1738
    %v1740 = vmax.f32 %v1560, %v1568
    %v1741 = vmax.f32 %v1740, %v1576
    %v1742 = vmax.f32 %v1741, %v1584
    %v1743 = vmax.f32 %v1742, %v1592
    %v1744 = vmax.f32 %v1743, %v1600
    %v1745 = vmax.f32 %v1744, %v1608
    %v1746 = vmax.f32 %v1745, %v1616
    %v1747 = vrot.slane %v1746, 4
    %v1748 = vmax.f32 %v1746, %v1747
    %v1749 = vrot.slane %v1748, 2
    %v1750 = vmax.f32 %v1748, %v1749
    %v1751 = vrot.slane %v1750, 1
    %v1752 = vmax.f32 %v1750, %v1751
    %v1753 = vmax.f32 %v1561, %v1569
    %v1754 = vmax.f32 %v1753, %v1577
    %v1755 = vmax.f32 %v1754, %v1585
    %v1756 = vmax.f32 %v1755, %v1593
    %v1757 = vmax.f32 %v1756, %v1601
    %v1758 = vmax.f32 %v1757, %v1609
    %v1759 = vmax.f32 %v1758, %v1617
    %v1760 = vrot.slane %v1759, 4
    %v1761 = vmax.f32 %v1759, %v1760
    %v1762 = vrot.slane %v1761, 2
    %v1763 = vmax.f32 %v1761, %v1762
    %v1764 = vrot.slane %v1763, 1
    %v1765 = vmax.f32 %v1763, %v1764
    %v1766 = vmax.f32 %v1562, %v1570
    %v1767 = vmax.f32 %v1766, %v1578
    %v1768 = vmax.f32 %v1767, %v1586
    %v1769 = vmax.f32 %v1768, %v1594
    %v1770 = vmax.f32 %v1769, %v1602
    %v1771 = vmax.f32 %v1770, %v1610
    %v1772 = vmax.f32 %v1771, %v1618
    %v1773 = vrot.slane %v1772, 4
    %v1774 = vmax.f32 %v1772, %v1773
    %v1775 = vrot.slane %v1774, 2
    %v1776 = vmax.f32 %v1774, %v1775
    %v1777 = vrot.slane %v1776, 1
    %v1778 = vmax.f32 %v1776, %v1777
    %v1779 = vmax.f32 %v1563, %v1571
    %v1780 = vmax.f32 %v1779, %v1579
    %v1781 = vmax.f32 %v1780, %v1587
    %v1782 = vmax.f32 %v1781, %v1595
    %v1783 = vmax.f32 %v1782, %v1603
    %v1784 = vmax.f32 %v1783, %v1611
    %v1785 = vmax.f32 %v1784, %v1619
    %v1786 = vrot.slane %v1785, 4
    %v1787 = vmax.f32 %v1785, %v1786
    %v1788 = vrot.slane %v1787, 2
    %v1789 = vmax.f32 %v1787, %v1788
    %v1790 = vrot.slane %v1789, 1
    %v1791 = vmax.f32 %v1789, %v1790
    %v1792 = vmax.f32 %v1564, %v1572
    %v1793 = vmax.f32 %v1792, %v1580
    %v1794 = vmax.f32 %v1793, %v1588
    %v1795 = vmax.f32 %v1794, %v1596
    %v1796 = vmax.f32 %v1795, %v1604
    %v1797 = vmax.f32 %v1796, %v1612
    %v1798 = vmax.f32 %v1797, %v1620
    %v1799 = vrot.slane %v1798, 4
    %v1800 = vmax.f32 %v1798, %v1799
    %v1801 = vrot.slane %v1800, 2
    %v1802 = vmax.f32 %v1800, %v1801
    %v1803 = vrot.slane %v1802, 1
    %v1804 = vmax.f32 %v1802, %v1803
    %v1805 = vmax.f32 %v1565, %v1573
    %v1806 = vmax.f32 %v1805, %v1581
    %v1807 = vmax.f32 %v1806, %v1589
    %v1808 = vmax.f32 %v1807, %v1597
    %v1809 = vmax.f32 %v1808, %v1605
    %v1810 = vmax.f32 %v1809, %v1613
    %v1811 = vmax.f32 %v1810, %v1621
    %v1812 = vrot.slane %v1811, 4
    %v1813 = vmax.f32 %v1811, %v1812
    %v1814 = vrot.slane %v1813, 2
    %v1815 = vmax.f32 %v1813, %v1814
    %v1816 = vrot.slane %v1815, 1
    %v1817 = vmax.f32 %v1815, %v1816
    %v1818 = vmax.f32 %v1566, %v1574
    %v1819 = vmax.f32 %v1818, %v1582
    %v1820 = vmax.f32 %v1819, %v1590
    %v1821 = vmax.f32 %v1820, %v1598
    %v1822 = vmax.f32 %v1821, %v1606
    %v1823 = vmax.f32 %v1822, %v1614
    %v1824 = vmax.f32 %v1823, %v1622
    %v1825 = vrot.slane %v1824, 4
    %v1826 = vmax.f32 %v1824, %v1825
    %v1827 = vrot.slane %v1826, 2
    %v1828 = vmax.f32 %v1826, %v1827
    %v1829 = vrot.slane %v1828, 1
    %v1830 = vmax.f32 %v1828, %v1829
    %v1831 = vld [vmem:[#allocation2] sm:$0xff]
    %v1832 = vld [vmem:[#allocation2 + $0x8] sm:$0xff]
    %v1849 = vcombine.low %v1635, %v1648
    %v1850 = vcombine.low %v1661, %v1674
    %v1852 = vunpack.c.l.s4 1983009808
    %v1853 = vunpack.c.0.s8 %v1852
    %v1854 = vlaneseq
    %v1855 = vshrl.u32 %v1854, 7
    %v1856 = vsub.s32 %v1853, %v1855
    %v1857 = vrot.slane %v1849, %v1856
    %v1859 = vunpack.c.l.s4 1983009808
    %v1860 = vunpack.c.0.s8 %v1859
    %v1861 = vlaneseq
    %v1862 = vshrl.u32 %v1861, 7
    %v1863 = vsub.s32 %v1860, %v1862
    %v1864 = vrot.slane %v1850, %v1863
    %v1865 = vcombine.low %v1857, %v1864
    %v1866 = vcombine.low %v1687, %v1700
    %v1867 = vcombine.low %v1713, %v1726
    %v1869 = vunpack.c.l.s4 1983009808
    %v1870 = vunpack.c.0.s8 %v1869
    %v1871 = vlaneseq
    %v1872 = vshrl.u32 %v1871, 7
    %v1873 = vsub.s32 %v1870, %v1872
    %v1874 = vrot.slane %v1866, %v1873
    %v1876 = vunpack.c.l.s4 1983009808
    %v1877 = vunpack.c.0.s8 %v1876
    %v1878 = vlaneseq
    %v1879 = vshrl.u32 %v1878, 7
    %v1880 = vsub.s32 %v1877, %v1879
    %v1881 = vrot.slane %v1867, %v1880
    %v1882 = vcombine.low %v1874, %v1881
    %v1883 = vcombine.low %v1739, %v1752
    %v1884 = vcombine.low %v1765, %v1778
    %v1886 = vunpack.c.l.s4 1983009808
    %v1887 = vunpack.c.0.s8 %v1886
    %v1888 = vlaneseq
    %v1889 = vshrl.u32 %v1888, 7
    %v1890 = vsub.s32 %v1887, %v1889
    %v1891 = vrot.slane %v1883, %v1890
    %v1893 = vunpack.c.l.s4 1983009808
    %v1894 = vunpack.c.0.s8 %v1893
    %v1895 = vlaneseq
    %v1896 = vshrl.u32 %v1895, 7
    %v1897 = vsub.s32 %v1894, %v1896
    %v1898 = vrot.slane %v1884, %v1897
    %v1899 = vcombine.low %v1891, %v1898
    %v1900 = vcombine.low %v1791, %v1804
    %v1901 = vcombine.low %v1817, %v1830
    %v1903 = vunpack.c.l.s4 1983009808
    %v1904 = vunpack.c.0.s8 %v1903
    %v1905 = vlaneseq
    %v1906 = vshrl.u32 %v1905, 7
    %v1907 = vsub.s32 %v1904, %v1906
    %v1908 = vrot.slane %v1900, %v1907
    %v1910 = vunpack.c.l.s4 1983009808
    %v1911 = vunpack.c.0.s8 %v1910
    %v1912 = vlaneseq
    %v1913 = vshrl.u32 %v1912, 7
    %v1914 = vsub.s32 %v1911, %v1913
    %v1915 = vrot.slane %v1901, %v1914
    %v1916 = vcombine.low %v1908, %v1915
    %vm1917 = vcmask 1044484
    %v1918 = vsel %vm1917, %v1865, %v1865
    %vm1919 = vcmask 1046534
    %v1920 = vsel %vm1919, %v1865, %v1918
    %v1921 = vrot.slane %v1899, 7
    %vm1922 = vcmask 1041409
    %v1923 = vsel %vm1922, %v1921, %v1920
    %vm1924 = vcmask 1043459
    %v1925 = vsel %vm1924, %v1921, %v1923
    %vm1926 = vcmask 1045509
    %v1927 = vsel %vm1926, %v1921, %v1925
    %vm1928 = vcmask 1047559
    %v1929 = vsel %vm1928, %v1921, %v1927
    %v1930 = vsel %vm1917, %v1882, %v1882
    %v1931 = vsel %vm1919, %v1882, %v1930
    %v1932 = vrot.slane %v1916, 7
    %v1933 = vsel %vm1922, %v1932, %v1931
    %v1934 = vsel %vm1924, %v1932, %v1933
    %v1935 = vsel %vm1926, %v1932, %v1934
    %v1936 = vsel %vm1928, %v1932, %v1935
    %v1939 = vmax.f32 %v1831, %v1929
    %v1940 = vmax.f32 %v1832, %v1936
    %1941 = vst [vmem:[#allocation2] sm:$0xff] %v1939
    %1942 = vst [vmem:[#allocation2 + $0x8] sm:$0xff] %v1940
    // Predicated region
    $region50: #{tpu_custom_call.1} parent=1 // pred_check
      %p1943 = pneg %p62
    $region51: #{tpu_custom_call.1} parent=1 // pred_check_branch
      %1945 = sbr.rel (%p1943) target = $region53
    $region52: #{tpu_custom_call.1} parent=1 // pred_region
      %v1946 = vld [vmem:[#allocation2] sm:$0xff]
      %v1947 = vld [vmem:[#allocation2 + $0x8] sm:$0xff]
      %v1950 = vcombine.high %v1946, %v1946
      %v1952 = vunpack.c.l.s4 1983009808
      %v1953 = vunpack.c.0.s8 %v1952
      %v1954 = vlaneseq
      %v1955 = vshrl.u32 %v1954, 7
      %v1956 = vsub.s32 %v1953, %v1955
      %v1957 = vrot.slane %v1946, %v1956
      %v1959 = vunpack.c.l.s4 1983009808
      %v1960 = vunpack.c.0.s8 %v1959
      %v1961 = vlaneseq
      %v1962 = vshrl.u32 %v1961, 7
      %v1963 = vsub.s32 %v1960, %v1962
      %v1964 = vrot.slane %v1950, %v1963
      %v1965 = vcombine.high %v1957, %v1957
      %v1966 = vcombine.high %v1964, %v1964
      %v1967 = vcombine.high %v1947, %v1947
      %v1969 = vunpack.c.l.s4 1983009808
      %v1970 = vunpack.c.0.s8 %v1969
      %v1971 = vlaneseq
      %v1972 = vshrl.u32 %v1971, 7
      %v1973 = vsub.s32 %v1970, %v1972
      %v1974 = vrot.slane %v1947, %v1973
      %v1976 = vunpack.c.l.s4 1983009808
      %v1977 = vunpack.c.0.s8 %v1976
      %v1978 = vlaneseq
      %v1979 = vshrl.u32 %v1978, 7
      %v1980 = vsub.s32 %v1977, %v1979
      %v1981 = vrot.slane %v1967, %v1980
      %v1982 = vcombine.high %v1974, %v1974
      %v1983 = vcombine.high %v1981, %v1981
      %v1992 = vpack.c.bf16 %v1957, %v1957
      %v1993 = vpack.c.bf16 %v1965, %v1965
      %v1994 = vpack.c.bf16 %v1964, %v1964
      %v1995 = vpack.c.bf16 %v1966, %v1966
      %v1996 = vpack.c.bf16 %v1974, %v1974
      %v1997 = vpack.c.bf16 %v1982, %v1982
      %v1998 = vpack.c.bf16 %v1981, %v1981
      %v1999 = vpack.c.bf16 %v1983, %v1983
      %v2000 = vld [vmem:[#allocation6] sm:$0xf]
      %v2001 = vld [vmem:[#allocation6 + $0x4] sm:$0xf]
      %v2002 = vld [vmem:[#allocation6 + $0x8] sm:$0xf]
      %v2003 = vld [vmem:[#allocation6 + $0xc] sm:$0xf]
      %v2004 = vld [vmem:[#allocation6 + $0x10] sm:$0xf]
      %v2005 = vld [vmem:[#allocation6 + $0x14] sm:$0xf]
      %v2006 = vld [vmem:[#allocation6 + $0x18] sm:$0xf]
      %v2007 = vld [vmem:[#allocation6 + $0x1c] sm:$0xf]
      %v2008 = vld [vmem:[#allocation6 + $0x20] sm:$0xf]
      %v2009 = vld [vmem:[#allocation6 + $0x24] sm:$0xf]
      %v2010 = vld [vmem:[#allocation6 + $0x28] sm:$0xf]
      %v2011 = vld [vmem:[#allocation6 + $0x2c] sm:$0xf]
      %v2012 = vld [vmem:[#allocation6 + $0x30] sm:$0xf]
      %v2013 = vld [vmem:[#allocation6 + $0x34] sm:$0xf]
      %v2014 = vld [vmem:[#allocation6 + $0x38] sm:$0xf]
      %v2015 = vld [vmem:[#allocation6 + $0x3c] sm:$0xf]
      %v2016 = vld [vmem:[#allocation6 + $0x40] sm:$0xf]
      %v2017 = vld [vmem:[#allocation6 + $0x44] sm:$0xf]
      %v2018 = vld [vmem:[#allocation6 + $0x48] sm:$0xf]
      %v2019 = vld [vmem:[#allocation6 + $0x4c] sm:$0xf]
      %v2020 = vld [vmem:[#allocation6 + $0x50] sm:$0xf]
      %v2021 = vld [vmem:[#allocation6 + $0x54] sm:$0xf]
      %v2022 = vld [vmem:[#allocation6 + $0x58] sm:$0xf]
      %v2023 = vld [vmem:[#allocation6 + $0x5c] sm:$0xf]
      %v2024 = vld [vmem:[#allocation6 + $0x60] sm:$0xf]
      %v2025 = vld [vmem:[#allocation6 + $0x64] sm:$0xf]
      %v2026 = vld [vmem:[#allocation6 + $0x68] sm:$0xf]
      %v2027 = vld [vmem:[#allocation6 + $0x6c] sm:$0xf]
      %v2028 = vld [vmem:[#allocation6 + $0x70] sm:$0xf]
      %v2029 = vld [vmem:[#allocation6 + $0x74] sm:$0xf]
      %v2030 = vld [vmem:[#allocation6 + $0x78] sm:$0xf]
      %v2031 = vld [vmem:[#allocation6 + $0x7c] sm:$0xf]
      %v2032 = vld [vmem:[#allocation6 + $0x80] sm:$0xf]
      %v2033 = vld [vmem:[#allocation6 + $0x84] sm:$0xf]
      %v2034 = vld [vmem:[#allocation6 + $0x88] sm:$0xf]
      %v2035 = vld [vmem:[#allocation6 + $0x8c] sm:$0xf]
      %v2036 = vld [vmem:[#allocation6 + $0x90] sm:$0xf]
      %v2037 = vld [vmem:[#allocation6 + $0x94] sm:$0xf]
      %v2038 = vld [vmem:[#allocation6 + $0x98] sm:$0xf]
      %v2039 = vld [vmem:[#allocation6 + $0x9c] sm:$0xf]
      %v2040 = vld [vmem:[#allocation6 + $0xa0] sm:$0xf]
      %v2041 = vld [vmem:[#allocation6 + $0xa4] sm:$0xf]
      %v2042 = vld [vmem:[#allocation6 + $0xa8] sm:$0xf]
      %v2043 = vld [vmem:[#allocation6 + $0xac] sm:$0xf]
      %v2044 = vld [vmem:[#allocation6 + $0xb0] sm:$0xf]
      %v2045 = vld [vmem:[#allocation6 + $0xb4] sm:$0xf]
      %v2046 = vld [vmem:[#allocation6 + $0xb8] sm:$0xf]
      %v2047 = vld [vmem:[#allocation6 + $0xbc] sm:$0xf]
      %v2048 = vld [vmem:[#allocation6 + $0xc0] sm:$0xf]
      %v2049 = vld [vmem:[#allocation6 + $0xc4] sm:$0xf]
      %v2050 = vld [vmem:[#allocation6 + $0xc8] sm:$0xf]
      %v2051 = vld [vmem:[#allocation6 + $0xcc] sm:$0xf]
      %v2052 = vld [vmem:[#allocation6 + $0xd0] sm:$0xf]
      %v2053 = vld [vmem:[#allocation6 + $0xd4] sm:$0xf]
      %v2054 = vld [vmem:[#allocation6 + $0xd8] sm:$0xf]
      %v2055 = vld [vmem:[#allocation6 + $0xdc] sm:$0xf]
      %v2056 = vld [vmem:[#allocation6 + $0xe0] sm:$0xf]
      %v2057 = vld [vmem:[#allocation6 + $0xe4] sm:$0xf]
      %v2058 = vld [vmem:[#allocation6 + $0xe8] sm:$0xf]
      %v2059 = vld [vmem:[#allocation6 + $0xec] sm:$0xf]
      %v2060 = vld [vmem:[#allocation6 + $0xf0] sm:$0xf]
      %v2061 = vld [vmem:[#allocation6 + $0xf4] sm:$0xf]
      %v2062 = vld [vmem:[#allocation6 + $0xf8] sm:$0xf]
      %v2063 = vld [vmem:[#allocation6 + $0xfc] sm:$0xf]
      %v2064 = vld [vmem:[#allocation6 + $0x100] sm:$0xf]
      %v2065 = vld [vmem:[#allocation6 + $0x104] sm:$0xf]
      %v2066 = vld [vmem:[#allocation6 + $0x108] sm:$0xf]
      %v2067 = vld [vmem:[#allocation6 + $0x10c] sm:$0xf]
      %v2068 = vld [vmem:[#allocation6 + $0x110] sm:$0xf]
      %v2069 = vld [vmem:[#allocation6 + $0x114] sm:$0xf]
      %v2070 = vld [vmem:[#allocation6 + $0x118] sm:$0xf]
      %v2071 = vld [vmem:[#allocation6 + $0x11c] sm:$0xf]
      %v2072 = vld [vmem:[#allocation6 + $0x120] sm:$0xf]
      %v2073 = vld [vmem:[#allocation6 + $0x124] sm:$0xf]
      %v2074 = vld [vmem:[#allocation6 + $0x128] sm:$0xf]
      %v2075 = vld [vmem:[#allocation6 + $0x12c] sm:$0xf]
      %v2076 = vld [vmem:[#allocation6 + $0x130] sm:$0xf]
      %v2077 = vld [vmem:[#allocation6 + $0x134] sm:$0xf]
      %v2078 = vld [vmem:[#allocation6 + $0x138] sm:$0xf]
      %v2079 = vld [vmem:[#allocation6 + $0x13c] sm:$0xf]
      %v2080 = vld [vmem:[#allocation6 + $0x140] sm:$0xf]
      %v2081 = vld [vmem:[#allocation6 + $0x144] sm:$0xf]
      %v2082 = vld [vmem:[#allocation6 + $0x148] sm:$0xf]
      %v2083 = vld [vmem:[#allocation6 + $0x14c] sm:$0xf]
      %v2084 = vld [vmem:[#allocation6 + $0x150] sm:$0xf]
      %v2085 = vld [vmem:[#allocation6 + $0x154] sm:$0xf]
      %v2086 = vld [vmem:[#allocation6 + $0x158] sm:$0xf]
      %v2087 = vld [vmem:[#allocation6 + $0x15c] sm:$0xf]
      %v2088 = vld [vmem:[#allocation6 + $0x160] sm:$0xf]
      %v2089 = vld [vmem:[#allocation6 + $0x164] sm:$0xf]
      %v2090 = vld [vmem:[#allocation6 + $0x168] sm:$0xf]
      %v2091 = vld [vmem:[#allocation6 + $0x16c] sm:$0xf]
      %v2092 = vld [vmem:[#allocation6 + $0x170] sm:$0xf]
      %v2093 = vld [vmem:[#allocation6 + $0x174] sm:$0xf]
      %v2094 = vld [vmem:[#allocation6 + $0x178] sm:$0xf]
      %v2095 = vld [vmem:[#allocation6 + $0x17c] sm:$0xf]
      %v2096 = vld [vmem:[#allocation6 + $0x180] sm:$0xf]
      %v2097 = vld [vmem:[#allocation6 + $0x184] sm:$0xf]
      %v2098 = vld [vmem:[#allocation6 + $0x188] sm:$0xf]
      %v2099 = vld [vmem:[#allocation6 + $0x18c] sm:$0xf]
      %v2100 = vld [vmem:[#allocation6 + $0x190] sm:$0xf]
      %v2101 = vld [vmem:[#allocation6 + $0x194] sm:$0xf]
      %v2102 = vld [vmem:[#allocation6 + $0x198] sm:$0xf]
      %v2103 = vld [vmem:[#allocation6 + $0x19c] sm:$0xf]
      %v2104 = vld [vmem:[#allocation6 + $0x1a0] sm:$0xf]
      %v2105 = vld [vmem:[#allocation6 + $0x1a4] sm:$0xf]
      %v2106 = vld [vmem:[#allocation6 + $0x1a8] sm:$0xf]
      %v2107 = vld [vmem:[#allocation6 + $0x1ac] sm:$0xf]
      %v2108 = vld [vmem:[#allocation6 + $0x1b0] sm:$0xf]
      %v2109 = vld [vmem:[#allocation6 + $0x1b4] sm:$0xf]
      %v2110 = vld [vmem:[#allocation6 + $0x1b8] sm:$0xf]
      %v2111 = vld [vmem:[#allocation6 + $0x1bc] sm:$0xf]
      %v2112 = vld [vmem:[#allocation6 + $0x1c0] sm:$0xf]
      %v2113 = vld [vmem:[#allocation6 + $0x1c4] sm:$0xf]
      %v2114 = vld [vmem:[#allocation6 + $0x1c8] sm:$0xf]
      %v2115 = vld [vmem:[#allocation6 + $0x1cc] sm:$0xf]
      %v2116 = vld [vmem:[#allocation6 + $0x1d0] sm:$0xf]
      %v2117 = vld [vmem:[#allocation6 + $0x1d4] sm:$0xf]
      %v2118 = vld [vmem:[#allocation6 + $0x1d8] sm:$0xf]
      %v2119 = vld [vmem:[#allocation6 + $0x1dc] sm:$0xf]
      %v2120 = vld [vmem:[#allocation6 + $0x1e0] sm:$0xf]
      %v2121 = vld [vmem:[#allocation6 + $0x1e4] sm:$0xf]
      %v2122 = vld [vmem:[#allocation6 + $0x1e8] sm:$0xf]
      %v2123 = vld [vmem:[#allocation6 + $0x1ec] sm:$0xf]
      %v2124 = vld [vmem:[#allocation6 + $0x1f0] sm:$0xf]
      %v2125 = vld [vmem:[#allocation6 + $0x1f4] sm:$0xf]
      %v2126 = vld [vmem:[#allocation6 + $0x1f8] sm:$0xf]
      %v2127 = vld [vmem:[#allocation6 + $0x1fc] sm:$0xf]
      %v2128 = vld [vmem:[%s8] sm:$0x1]
      %v2130 = vlaneseq
      %v2131 = vshrl.u32 %v2130, 7
      %v2132 = vsub.s32 0, %v2131
      %v2133 = vrot.slane %v2128, %v2132
      %v2263 = vunpack.c.l.b16 %v2000
      %v2264 = vunpack.c.l.b16 %v2001
      %v2265 = vunpack.c.l.b16 %v2002
      %v2266 = vunpack.c.l.b16 %v2003
      %v2267 = vunpack.c.l.b16 %v2004
      %v2268 = vunpack.c.l.b16 %v2005
      %v2269 = vunpack.c.l.b16 %v2006
      %v2270 = vunpack.c.l.b16 %v2007
      %v2271 = vunpack.c.l.b16 %v2008
      %v2272 = vunpack.c.l.b16 %v2009
      %v2273 = vunpack.c.l.b16 %v2010
      %v2274 = vunpack.c.l.b16 %v2011
      %v2275 = vunpack.c.l.b16 %v2012
      %v2276 = vunpack.c.l.b16 %v2013
      %v2277 = vunpack.c.l.b16 %v2014
      %v2278 = vunpack.c.l.b16 %v2015
      %v2279 = vunpack.c.l.b16 %v2016
      %v2280 = vunpack.c.l.b16 %v2017
      %v2281 = vunpack.c.l.b16 %v2018
      %v2282 = vunpack.c.l.b16 %v2019
      %v2283 = vunpack.c.l.b16 %v2020
      %v2284 = vunpack.c.l.b16 %v2021
      %v2285 = vunpack.c.l.b16 %v2022
      %v2286 = vunpack.c.l.b16 %v2023
      %v2287 = vunpack.c.l.b16 %v2024
      %v2288 = vunpack.c.l.b16 %v2025
      %v2289 = vunpack.c.l.b16 %v2026
      %v2290 = vunpack.c.l.b16 %v2027
      %v2291 = vunpack.c.l.b16 %v2028
      %v2292 = vunpack.c.l.b16 %v2029
      %v2293 = vunpack.c.l.b16 %v2030
      %v2294 = vunpack.c.l.b16 %v2031
      %v2295 = vunpack.c.l.b16 %v2032
      %v2296 = vunpack.c.l.b16 %v2033
      %v2297 = vunpack.c.l.b16 %v2034
      %v2298 = vunpack.c.l.b16 %v2035
      %v2299 = vunpack.c.l.b16 %v2036
      %v2300 = vunpack.c.l.b16 %v2037
      %v2301 = vunpack.c.l.b16 %v2038
      %v2302 = vunpack.c.l.b16 %v2039
      %v2303 = vunpack.c.l.b16 %v2040
      %v2304 = vunpack.c.l.b16 %v2041
      %v2305 = vunpack.c.l.b16 %v2042
      %v2306 = vunpack.c.l.b16 %v2043
      %v2307 = vunpack.c.l.b16 %v2044
      %v2308 = vunpack.c.l.b16 %v2045
      %v2309 = vunpack.c.l.b16 %v2046
      %v2310 = vunpack.c.l.b16 %v2047
      %v2311 = vunpack.c.l.b16 %v2048
      %v2312 = vunpack.c.l.b16 %v2049
      %v2313 = vunpack.c.l.b16 %v2050
      %v2314 = vunpack.c.l.b16 %v2051
      %v2315 = vunpack.c.l.b16 %v2052
      %v2316 = vunpack.c.l.b16 %v2053
      %v2317 = vunpack.c.l.b16 %v2054
      %v2318 = vunpack.c.l.b16 %v2055
      %v2319 = vunpack.c.l.b16 %v2056
      %v2320 = vunpack.c.l.b16 %v2057
      %v2321 = vunpack.c.l.b16 %v2058
      %v2322 = vunpack.c.l.b16 %v2059
      %v2323 = vunpack.c.l.b16 %v2060
      %v2324 = vunpack.c.l.b16 %v2061
      %v2325 = vunpack.c.l.b16 %v2062
      %v2326 = vunpack.c.l.b16 %v2063
      %v2327 = vunpack.c.l.b16 %v2064
      %v2328 = vunpack.c.l.b16 %v2065
      %v2329 = vunpack.c.l.b16 %v2066
      %v2330 = vunpack.c.l.b16 %v2067
      %v2331 = vunpack.c.l.b16 %v2068
      %v2332 = vunpack.c.l.b16 %v2069
      %v2333 = vunpack.c.l.b16 %v2070
      %v2334 = vunpack.c.l.b16 %v2071
      %v2335 = vunpack.c.l.b16 %v2072
      %v2336 = vunpack.c.l.b16 %v2073
      %v2337 = vunpack.c.l.b16 %v2074
      %v2338 = vunpack.c.l.b16 %v2075
      %v2339 = vunpack.c.l.b16 %v2076
      %v2340 = vunpack.c.l.b16 %v2077
      %v2341 = vunpack.c.l.b16 %v2078
      %v2342 = vunpack.c.l.b16 %v2079
      %v2343 = vunpack.c.l.b16 %v2080
      %v2344 = vunpack.c.l.b16 %v2081
      %v2345 = vunpack.c.l.b16 %v2082
      %v2346 = vunpack.c.l.b16 %v2083
      %v2347 = vunpack.c.l.b16 %v2084
      %v2348 = vunpack.c.l.b16 %v2085
      %v2349 = vunpack.c.l.b16 %v2086
      %v2350 = vunpack.c.l.b16 %v2087
      %v2351 = vunpack.c.l.b16 %v2088
      %v2352 = vunpack.c.l.b16 %v2089
      %v2353 = vunpack.c.l.b16 %v2090
      %v2354 = vunpack.c.l.b16 %v2091
      %v2355 = vunpack.c.l.b16 %v2092
      %v2356 = vunpack.c.l.b16 %v2093
      %v2357 = vunpack.c.l.b16 %v2094
      %v2358 = vunpack.c.l.b16 %v2095
      %v2359 = vunpack.c.l.b16 %v2096
      %v2360 = vunpack.c.l.b16 %v2097
      %v2361 = vunpack.c.l.b16 %v2098
      %v2362 = vunpack.c.l.b16 %v2099
      %v2363 = vunpack.c.l.b16 %v2100
      %v2364 = vunpack.c.l.b16 %v2101
      %v2365 = vunpack.c.l.b16 %v2102
      %v2366 = vunpack.c.l.b16 %v2103
      %v2367 = vunpack.c.l.b16 %v2104
      %v2368 = vunpack.c.l.b16 %v2105
      %v2369 = vunpack.c.l.b16 %v2106
      %v2370 = vunpack.c.l.b16 %v2107
      %v2371 = vunpack.c.l.b16 %v2108
      %v2372 = vunpack.c.l.b16 %v2109
      %v2373 = vunpack.c.l.b16 %v2110
      %v2374 = vunpack.c.l.b16 %v2111
      %v2375 = vunpack.c.l.b16 %v2112
      %v2376 = vunpack.c.l.b16 %v2113
      %v2377 = vunpack.c.l.b16 %v2114
      %v2378 = vunpack.c.l.b16 %v2115
      %v2379 = vunpack.c.l.b16 %v2116
      %v2380 = vunpack.c.l.b16 %v2117
      %v2381 = vunpack.c.l.b16 %v2118
      %v2382 = vunpack.c.l.b16 %v2119
      %v2383 = vunpack.c.l.b16 %v2120
      %v2384 = vunpack.c.l.b16 %v2121
      %v2385 = vunpack.c.l.b16 %v2122
      %v2386 = vunpack.c.l.b16 %v2123
      %v2387 = vunpack.c.l.b16 %v2124
      %v2388 = vunpack.c.l.b16 %v2125
      %v2389 = vunpack.c.l.b16 %v2126
      %v2390 = vunpack.c.l.b16 %v2127
      %v2391 = vpack.c.b16 %v2264, %v2263
      %v2392 = vpack.c.b16 %v2266, %v2265
      %v2393 = vpack.c.b16 %v2268, %v2267
      %v2394 = vpack.c.b16 %v2270, %v2269
      %v2395 = vpack.c.b16 %v2272, %v2271
      %v2396 = vpack.c.b16 %v2274, %v2273
      %v2397 = vpack.c.b16 %v2276, %v2275
      %v2398 = vpack.c.b16 %v2278, %v2277
      %v2399 = vpack.c.b16 %v2280, %v2279
      %v2400 = vpack.c.b16 %v2282, %v2281
      %v2401 = vpack.c.b16 %v2284, %v2283
      %v2402 = vpack.c.b16 %v2286, %v2285
      %v2403 = vpack.c.b16 %v2288, %v2287
      %v2404 = vpack.c.b16 %v2290, %v2289
      %v2405 = vpack.c.b16 %v2292, %v2291
      %v2406 = vpack.c.b16 %v2294, %v2293
      %v2407 = vpack.c.b16 %v2296, %v2295
      %v2408 = vpack.c.b16 %v2298, %v2297
      %v2409 = vpack.c.b16 %v2300, %v2299
      %v2410 = vpack.c.b16 %v2302, %v2301
      %v2411 = vpack.c.b16 %v2304, %v2303
      %v2412 = vpack.c.b16 %v2306, %v2305
      %v2413 = vpack.c.b16 %v2308, %v2307
      %v2414 = vpack.c.b16 %v2310, %v2309
      %v2415 = vpack.c.b16 %v2312, %v2311
      %v2416 = vpack.c.b16 %v2314, %v2313
      %v2417 = vpack.c.b16 %v2316, %v2315
      %v2418 = vpack.c.b16 %v2318, %v2317
      %v2419 = vpack.c.b16 %v2320, %v2319
      %v2420 = vpack.c.b16 %v2322, %v2321
      %v2421 = vpack.c.b16 %v2324, %v2323
      %v2422 = vpack.c.b16 %v2326, %v2325
      %v2423 = vpack.c.b16 %v2328, %v2327
      %v2424 = vpack.c.b16 %v2330, %v2329
      %v2425 = vpack.c.b16 %v2332, %v2331
      %v2426 = vpack.c.b16 %v2334, %v2333
      %v2427 = vpack.c.b16 %v2336, %v2335
      %v2428 = vpack.c.b16 %v2338, %v2337
      %v2429 = vpack.c.b16 %v2340, %v2339
      %v2430 = vpack.c.b16 %v2342, %v2341
      %v2431 = vpack.c.b16 %v2344, %v2343
      %v2432 = vpack.c.b16 %v2346, %v2345
      %v2433 = vpack.c.b16 %v2348, %v2347
      %v2434 = vpack.c.b16 %v2350, %v2349
      %v2435 = vpack.c.b16 %v2352, %v2351
      %v2436 = vpack.c.b16 %v2354, %v2353
      %v2437 = vpack.c.b16 %v2356, %v2355
      %v2438 = vpack.c.b16 %v2358, %v2357
      %v2439 = vpack.c.b16 %v2360, %v2359
      %v2440 = vpack.c.b16 %v2362, %v2361
      %v2441 = vpack.c.b16 %v2364, %v2363
      %v2442 = vpack.c.b16 %v2366, %v2365
      %v2443 = vpack.c.b16 %v2368, %v2367
      %v2444 = vpack.c.b16 %v2370, %v2369
      %v2445 = vpack.c.b16 %v2372, %v2371
      %v2446 = vpack.c.b16 %v2374, %v2373
      %v2447 = vpack.c.b16 %v2376, %v2375
      %v2448 = vpack.c.b16 %v2378, %v2377
      %v2449 = vpack.c.b16 %v2380, %v2379
      %v2450 = vpack.c.b16 %v2382, %v2381
      %v2451 = vpack.c.b16 %v2384, %v2383
      %v2452 = vpack.c.b16 %v2386, %v2385
      %v2453 = vpack.c.b16 %v2388, %v2387
      %v2454 = vpack.c.b16 %v2390, %v2389
      %2519 = vmatprep.subr.bf16.mxu0 0
      %2520 = vmatpush1.bf16.msra.mxu0 %v2391
      %2521 = vmatprep.subr.bf16.mxu0 0
      %2522 = vmatpush1.bf16.msra.mxu0 %v2392
      %2523 = vmatprep.subr.bf16.mxu0 0
      %2524 = vmatpush1.bf16.msra.mxu0 %v2393
      %2525 = vmatprep.subr.bf16.mxu0 0
      %2526 = vmatpush1.bf16.msra.mxu0 %v2394
      %2527 = vmatprep.subr.bf16.mxu0 0
      %2528 = vmatpush1.bf16.msra.mxu0 %v2395
      %2529 = vmatprep.subr.bf16.mxu0 0
      %2530 = vmatpush1.bf16.msra.mxu0 %v2396
      %2531 = vmatprep.subr.bf16.mxu0 0
      %2532 = vmatpush1.bf16.msra.mxu0 %v2397
      %2533 = vmatprep.subr.bf16.mxu0 0
      %2534 = vmatpush1.bf16.msra.mxu0 %v2398
      %2535 = vmatprep.subr.bf16.mxu0 0
      %2536 = vmatpush1.bf16.msra.mxu0 %v2399
      %2537 = vmatprep.subr.bf16.mxu0 0
      %2538 = vmatpush1.bf16.msra.mxu0 %v2400
      %2539 = vmatprep.subr.bf16.mxu0 0
      %2540 = vmatpush1.bf16.msra.mxu0 %v2401
      %2541 = vmatprep.subr.bf16.mxu0 0
      %2542 = vmatpush1.bf16.msra.mxu0 %v2402
      %2543 = vmatprep.subr.bf16.mxu0 0
      %2544 = vmatpush1.bf16.msra.mxu0 %v2403
      %2545 = vmatprep.subr.bf16.mxu0 0
      %2546 = vmatpush1.bf16.msra.mxu0 %v2404
      %2547 = vmatprep.subr.bf16.mxu0 0
      %2548 = vmatpush1.bf16.msra.mxu0 %v2405
      %2549 = vmatprep.subr.bf16.mxu0 0
      %2550 = vmatpush1.bf16.msra.mxu0 %v2406
      %2551 = vmatprep.mubr.bf16.mxu0 %v1993
      %2552 = vmatmul.mubr.bf16.gmra.mrb[0].mxu0 %v1992
      %v2553 = vpop.f32.mrb[0].mxu0
      %v2554 = vadd.f32 %v2133, %v2553
      %v2555 = vpop.f32.mrb[0].mxu0
      %v2556 = vpop.f32.mrb[0].mxu0
      %v2557 = vpop.f32.mrb[0].mxu0
      %2558 = vdwg.mxu0
      %2559 = vmatprep.subr.bf16.mxu0 0
      %2560 = vmatpush1.bf16.msra.mxu0 %v2407
      %2561 = vmatprep.subr.bf16.mxu0 0
      %2562 = vmatpush1.bf16.msra.mxu0 %v2408
      %2563 = vmatprep.subr.bf16.mxu0 0
      %2564 = vmatpush1.bf16.msra.mxu0 %v2409
      %2565 = vmatprep.subr.bf16.mxu0 0
      %2566 = vmatpush1.bf16.msra.mxu0 %v2410
      %2567 = vmatprep.subr.bf16.mxu0 0
      %2568 = vmatpush1.bf16.msra.mxu0 %v2411
      %2569 = vmatprep.subr.bf16.mxu0 0
      %2570 = vmatpush1.bf16.msra.mxu0 %v2412
      %2571 = vmatprep.subr.bf16.mxu0 0
      %2572 = vmatpush1.bf16.msra.mxu0 %v2413
      %2573 = vmatprep.subr.bf16.mxu0 0
      %2574 = vmatpush1.bf16.msra.mxu0 %v2414
      %2575 = vmatprep.subr.bf16.mxu0 0
      %2576 = vmatpush1.bf16.msra.mxu0 %v2415
      %2577 = vmatprep.subr.bf16.mxu0 0
      %2578 = vmatpush1.bf16.msra.mxu0 %v2416
      %2579 = vmatprep.subr.bf16.mxu0 0
      %2580 = vmatpush1.bf16.msra.mxu0 %v2417
      %2581 = vmatprep.subr.bf16.mxu0 0
      %2582 = vmatpush1.bf16.msra.mxu0 %v2418
      %2583 = vmatprep.subr.bf16.mxu0 0
      %2584 = vmatpush1.bf16.msra.mxu0 %v2419
      %2585 = vmatprep.subr.bf16.mxu0 0
      %2586 = vmatpush1.bf16.msra.mxu0 %v2420
      %2587 = vmatprep.subr.bf16.mxu0 0
      %2588 = vmatpush1.bf16.msra.mxu0 %v2421
      %2589 = vmatprep.subr.bf16.mxu0 0
      %2590 = vmatpush1.bf16.msra.mxu0 %v2422
      %2591 = vmatprep.mubr.bf16.mxu0 %v1995
      %2592 = vmatmul.mubr.bf16.gmra.mrb[0].mxu0 %v1994
      %v2593 = vpop.f32.mrb[0].mxu0
      %v2594 = vadd.f32 %v2554, %v2593
      %v2595 = vpop.f32.mrb[0].mxu0
      %v2596 = vpop.f32.mrb[0].mxu0
      %v2597 = vpop.f32.mrb[0].mxu0
      %2598 = vdwg.mxu0
      %2599 = vmatprep.subr.bf16.mxu0 0
      %2600 = vmatpush1.bf16.msra.mxu0 %v2423
      %2601 = vmatprep.subr.bf16.mxu0 0
      %2602 = vmatpush1.bf16.msra.mxu0 %v2424
      %2603 = vmatprep.subr.bf16.mxu0 0
      %2604 = vmatpush1.bf16.msra.mxu0 %v2425
      %2605 = vmatprep.subr.bf16.mxu0 0
      %2606 = vmatpush1.bf16.msra.mxu0 %v2426
      %2607 = vmatprep.subr.bf16.mxu0 0
      %2608 = vmatpush1.bf16.msra.mxu0 %v2427
      %2609 = vmatprep.subr.bf16.mxu0 0
      %2610 = vmatpush1.bf16.msra.mxu0 %v2428
      %2611 = vmatprep.subr.bf16.mxu0 0
      %2612 = vmatpush1.bf16.msra.mxu0 %v2429
      %2613 = vmatprep.subr.bf16.mxu0 0
      %2614 = vmatpush1.bf16.msra.mxu0 %v2430
      %2615 = vmatprep.subr.bf16.mxu0 0
      %2616 = vmatpush1.bf16.msra.mxu0 %v2431
      %2617 = vmatprep.subr.bf16.mxu0 0
      %2618 = vmatpush1.bf16.msra.mxu0 %v2432
      %2619 = vmatprep.subr.bf16.mxu0 0
      %2620 = vmatpush1.bf16.msra.mxu0 %v2433
      %2621 = vmatprep.subr.bf16.mxu0 0
      %2622 = vmatpush1.bf16.msra.mxu0 %v2434
      %2623 = vmatprep.subr.bf16.mxu0 0
      %2624 = vmatpush1.bf16.msra.mxu0 %v2435
      %2625 = vmatprep.subr.bf16.mxu0 0
      %2626 = vmatpush1.bf16.msra.mxu0 %v2436
      %2627 = vmatprep.subr.bf16.mxu0 0
      %2628 = vmatpush1.bf16.msra.mxu0 %v2437
      %2629 = vmatprep.subr.bf16.mxu0 0
      %2630 = vmatpush1.bf16.msra.mxu0 %v2438
      %2631 = vmatprep.mubr.bf16.mxu0 %v1997
      %2632 = vmatmul.mubr.bf16.gmra.mrb[0].mxu0 %v1996
      %v2633 = vpop.f32.mrb[0].mxu0
      %v2634 = vadd.f32 %v2594, %v2633
      %v2635 = vpop.f32.mrb[0].mxu0
      %v2636 = vpop.f32.mrb[0].mxu0
      %v2637 = vpop.f32.mrb[0].mxu0
      %2638 = vdwg.mxu0
      %2639 = vmatprep.subr.bf16.mxu0 0
      %2640 = vmatpush1.bf16.msra.mxu0 %v2439
      %2641 = vmatprep.subr.bf16.mxu0 0
      %2642 = vmatpush1.bf16.msra.mxu0 %v2440
      %2643 = vmatprep.subr.bf16.mxu0 0
      %2644 = vmatpush1.bf16.msra.mxu0 %v2441
      %2645 = vmatprep.subr.bf16.mxu0 0
      %2646 = vmatpush1.bf16.msra.mxu0 %v2442
      %2647 = vmatprep.subr.bf16.mxu0 0
      %2648 = vmatpush1.bf16.msra.mxu0 %v2443
      %2649 = vmatprep.subr.bf16.mxu0 0
      %2650 = vmatpush1.bf16.msra.mxu0 %v2444
      %2651 = vmatprep.subr.bf16.mxu0 0
      %2652 = vmatpush1.bf16.msra.mxu0 %v2445
      %2653 = vmatprep.subr.bf16.mxu0 0
      %2654 = vmatpush1.bf16.msra.mxu0 %v2446
      %2655 = vmatprep.subr.bf16.mxu0 0
      %2656 = vmatpush1.bf16.msra.mxu0 %v2447
      %2657 = vmatprep.subr.bf16.mxu0 0
      %2658 = vmatpush1.bf16.msra.mxu0 %v2448
      %2659 = vmatprep.subr.bf16.mxu0 0
      %2660 = vmatpush1.bf16.msra.mxu0 %v2449
      %2661 = vmatprep.subr.bf16.mxu0 0
      %2662 = vmatpush1.bf16.msra.mxu0 %v2450
      %2663 = vmatprep.subr.bf16.mxu0 0
      %2664 = vmatpush1.bf16.msra.mxu0 %v2451
      %2665 = vmatprep.subr.bf16.mxu0 0
      %2666 = vmatpush1.bf16.msra.mxu0 %v2452
      %2667 = vmatprep.subr.bf16.mxu0 0
      %2668 = vmatpush1.bf16.msra.mxu0 %v2453
      %2669 = vmatprep.subr.bf16.mxu0 0
      %2670 = vmatpush1.bf16.msra.mxu0 %v2454
      %2671 = vmatprep.mubr.bf16.mxu0 %v1999
      %2672 = vmatmul.mubr.bf16.gmra.mrb[0].mxu0 %v1998
      %v2673 = vpop.f32.mrb[0].mxu0
      %v2674 = vadd.f32 %v2634, %v2673
      %v2675 = vpop.f32.mrb[0].mxu0
      %v2676 = vpop.f32.mrb[0].mxu0
      %v2677 = vpop.f32.mrb[0].mxu0
      %2678 = vdwg.mxu0
      %v2679 = vmax.f32 %v2674, 0.0
      %2680 = vst [vmem:[#allocation8] sm:$0x3] %v2679
    $region53: #{tpu_custom_call.1} parent=1 // pred_fallthru
      _
    // Predicated region
    $region54: #{tpu_custom_call.1} parent=1 // pred_check
      _
    $region55: #{tpu_custom_call.1} parent=1 // pred_check_branch
      %2682 = sbr.rel (0) target = $region57
    $region56: #{tpu_custom_call.1} parent=1 // pred_region
      %s2684 = ssub.s32 32, 32
      %2685 = vsyncadd [#allocation5], %s2684
      %s2687 = sshll.u32 [#allocation8], 4
      %s2688 = int_to_ptr.vmem [resolvable:$true] %s2687
      %2690 = dma.vmem_to_hbm [thread:$0]  %s2688, 32, %s9, [#allocation5]
    $region57: #{tpu_custom_call.1} parent=1 // pred_fallthru
      _
    // Predicated region
    $region58: #{tpu_custom_call.1} parent=1 // pred_check
      _
    $region59: #{tpu_custom_call.1} parent=1 // pred_check_branch
      %2692 = sbr.rel (0) target = $region61
    $region60: #{tpu_custom_call.1} parent=1 // pred_region
      %2693 = dma.done [#allocation5], 32
    $region61: #{tpu_custom_call.1} parent=1 // pred_fallthru
      _
    %2694 = vsyncpa [#allocation4], 1
    %2695 = vsyncpa [#allocation7], 1
    %2696 = vsyncpa [#allocation5], 1

</llo_original>
